<compile_context>
chip_gen: v7x
topology: tpu7x:2x2x1
jax: 0.10.0
libtpu: 0.0.40
codegen_flags: <defaults>
</compile_context>

<pallas_src>
import functools

import jax
import jax.numpy as jnp
import numpy as np
from jax.experimental import pallas as pl
from jax.experimental.pallas import tpu as pltpu


def _sigmoid(z):
    # logistic via tanh identity: runs on the EUP slot instead of VPU divide.
    return 0.5 * jnp.tanh(0.5 * z) + 0.5


def _base_block1_kernel(v3_ref, wconv_ref, bconv_ref, gamma_ref, beta_ref,
                        w1_ref, w2_ref, wsa_ref, out_ref, *, strides):
    # v3_ref:    (B, 3, L)     de-interleaved input "columns" (j = 0..2), L on lanes
    # wconv_ref: (9, C, 1)     conv weight, tap-major (k = 3*i + j)
    # bconv/gamma/beta: (C, 1)
    # w1_ref: (C//16, C)   w2_ref: (C, C//16)   wsa_ref: (2, 7) in SMEM
    # out_ref: (B, C, L_out)   channels-first (matches PyTorch), lane-dense in L
    B, C, L_out = out_ref.shape
    v3 = v3_ref[...]
    w9 = wconv_ref[...]                                         # (9, C, 1)

    # ---- conv1: 9 VPU FMAs (K=9, small C would waste the MXU) --------------
    x = jnp.broadcast_to(bconv_ref[...][None], (B, C, L_out))   # bias init
    for i in range(3):
        for j in range(3):
            if strides == 1:
                tap = v3[:, j, i:i + L_out]                     # (B, L_out) lane shift
            else:
                tap = v3[:, j, i:i + strides * (L_out - 1) + 1:strides]
            x = x + tap[:, None, :] * w9[3 * i + j][None]       # (B,1,L)*(1,C,1)

    # ---- BatchNorm1d (train-mode batch stats), affine fused with ReLU ------
    inv_n = 1.0 / (B * L_out)
    mean = jnp.sum(jnp.sum(x, axis=2, keepdims=True), axis=0, keepdims=True) * inv_n
    d = x - mean
    var = jnp.sum(jnp.sum(d * d, axis=2, keepdims=True), axis=0, keepdims=True) * inv_n
    scale = gamma_ref[...][None] * jax.lax.rsqrt(var + 1e-5)    # (1, C, 1)
    x = jnp.maximum(d * scale + beta_ref[...][None], 0.0)       # BN + ReLU in one pass

    # ---- ChannelAttention: pack (avg | max) x batch along lanes, 2 matmuls --
    avg_c = jnp.mean(x, axis=2, keepdims=True)                  # (B, C, 1)
    max_c = jnp.max(x, axis=2, keepdims=True)                   # (B, C, 1)
    pools = jnp.concatenate([avg_c[b] for b in range(B)]
                            + [max_c[b] for b in range(B)], axis=1)     # (C, 2B)
    h = jnp.maximum(jnp.dot(w1_ref[...], pools,
                            preferred_element_type=jnp.float32), 0.0)   # (C/16, 2B)
    g = jnp.dot(w2_ref[...], h, preferred_element_type=jnp.float32)     # (C,   2B)
    ca = _sigmoid(jnp.stack([g[:, b:b + 1] + g[:, B + b:B + b + 1]
                             for b in range(B)], axis=0))                # (B, C, 1)
    x = x * ca

    # ---- SpatialAttention: 7-tap conv (pad=3) over the lane axis ------------
    avg_s = jnp.mean(x, axis=1, keepdims=True)                  # (B, 1, L_out)
    max_s = jnp.max(x, axis=1, keepdims=True)                   # (B, 1, L_out)
    zpad = jnp.zeros((B, 1, 3), dtype=x.dtype)
    pa = jnp.concatenate([zpad, avg_s, zpad], axis=2)           # (B, 1, L_out+6)
    pm = jnp.concatenate([zpad, max_s, zpad], axis=2)
    logit = jnp.zeros((B, 1, L_out), dtype=x.dtype)
    for k in range(7):                                          # static 7-tap unroll
        logit = (logit
                 + wsa_ref[0, k] * pa[:, :, k:k + L_out]
                 + wsa_ref[1, k] * pm[:, :, k:k + L_out])
    out_ref[...] = x * _sigmoid(logit)                          # lane-dense store


def base_block1_forward(x, params, planes, strides=1):
    """Pallas implementation of BaseBlock1.forward. Returns (B, planes, L_out)."""
    B = x.shape[0]
    total = x.size // B
    assert total % 3 == 0, "input numel/batch must be divisible by 3"
    L = total // 3
    L_out = (L - 3) // strides + 1
    C = planes

    # De-interleave the 3 input columns; far cheaper than the old (B,L_out,9) im2col.
    v3 = jnp.transpose(x.reshape(B, L, 3).astype(jnp.float32), (0, 2, 1))   # (B, 3, L)

    wconv = params["w_conv"].reshape(C, 9).T.reshape(9, C, 1).astype(jnp.float32)
    bconv = params["b_conv"].reshape(C, 1).astype(jnp.float32)
    gamma = params["gamma"].reshape(C, 1).astype(jnp.float32)
    beta = params["beta"].reshape(C, 1).astype(jnp.float32)
    w1 = params["w_fc1"].astype(jnp.float32)                    # (C//16, C)
    w2 = params["w_fc2"].astype(jnp.float32)                    # (C, C//16)
    wsa = params["w_sa"].reshape(2, 7).astype(jnp.float32)

    vmem = pl.BlockSpec(memory_space=pltpu.MemorySpace.VMEM)
    smem = pl.BlockSpec(memory_space=pltpu.MemorySpace.SMEM)

    # Scoped-VMEM sizing: ~live copies of the (B,C,L_out) activation + inputs/params.
    act_bytes = B * C * L_out * 4
    in_bytes = B * 3 * L * 4
    vmem_limit = int(min(max(12 * act_bytes + 4 * in_bytes + (1 << 20), 16 << 20), 48 << 20))

    flops = int(2 * 9 * B * C * L_out                 # conv FMAs
                + 12 * B * C * L_out                  # BN/ReLU/ca/sa elementwise
                + 2 * 2 * (C // 16) * C * 2 * B       # channel-attention MLP
                + 4 * 7 * B * L_out)                  # spatial 7-tap conv
    cost = pl.CostEstimate(
        flops=flops,
        transcendentals=int(B * C + B * L_out),
        bytes_accessed=int(4 * (B * 3 * L + B * C * L_out
                                + 9 * C + 4 * C + 2 * (C // 16) * C + 14)))

    # NOTE: gridless single-invocation design (BN needs global batch stats and demo
    # shapes are tiny).  For large L_out, an L-tiled grid with a two-pass BN-stats
    # structure would enable pipelining / v7x megacore sharding.
    out = pl.pallas_call(
        functools.partial(_base_block1_kernel, strides=strides),
        out_shape=jax.ShapeDtypeStruct((B, C, L_out), jnp.float32),
        in_specs=[vmem, vmem, vmem, vmem, vmem, vmem, vmem, smem],
        out_specs=vmem,
        compiler_params=pltpu.CompilerParams(vmem_limit_bytes=vmem_limit),
        cost_estimate=cost,
    )(v3, wconv, bconv, gamma, beta, w1, w2, wsa)

    # Already (B, C, L_out) == PyTorch layout: no output transpose needed.
    return out


def base_block1_reference(x, params, planes, strides=1):
    """Pure-JAX reference mirroring the PyTorch forward."""
    B = x.shape[0]
    total = x.size // B
    L = total // 3
    v = x.reshape(B, 1, L, 3).astype(jnp.float32)
    out = jax.lax.conv_general_dilated(
        v, params["w_conv"], window_strides=(strides, 3), padding="VALID",
        dimension_numbers=("NCHW", "OIHW", "NCHW"))             # (B, C, L_out, 1)
    out = out[..., 0] + params["b_conv"][None, :, None]         # (B, C, L_out)
    mean = out.mean(axis=(0, 2), keepdims=True)
    var = ((out - mean) ** 2).mean(axis=(0, 2), keepdims=True)
    out = (out - mean) / jnp.sqrt(var + 1e-5)
    out = out * params["gamma"][None, :, None] + params["beta"][None, :, None]
    out = jnp.maximum(out, 0.0)
    # channel attention
    avg_c = out.mean(axis=2)
    max_c = out.max(axis=2)
    mlp = lambda z: jnp.maximum(z @ params["w_fc1"].T, 0.0) @ params["w_fc2"].T
    ca = jax.nn.sigmoid(mlp(avg_c) + mlp(max_c))                # (B, C)
    out = out * ca[:, :, None]
    # spatial attention
    cat = jnp.concatenate([out.mean(axis=1, keepdims=True),
                           out.max(axis=1, keepdims=True)], axis=1)  # (B, 2, L_out)
    sa = jax.lax.conv_general_dilated(
        cat, params["w_sa"], window_strides=(1,), padding=((3, 3),),
        dimension_numbers=("NCH", "OIH", "NCH"))                # (B, 1, L_out)
    return out * jax.nn.sigmoid(sa)


if __name__ == "__main__":
    inplanes, planes, strides = 1, 32, 1     # planes must be >= 16 (ratio // 16)
    batch, L = 2, 16                         # x numel/batch = 3*L = 48

    key = jax.random.PRNGKey(0)
    ks = jax.random.split(key, 8)
    params = {
        "w_conv": 0.3 * jax.random.normal(ks[0], (planes, inplanes, 3, 3), jnp.float32),
        "b_conv": 0.1 * jax.random.normal(ks[1], (planes,), jnp.float32),
        "gamma": 1.0 + 0.1 * jax.random.normal(ks[2], (planes,), jnp.float32),
        "beta": 0.1 * jax.random.normal(ks[3], (planes,), jnp.float32),
        "w_fc1": 0.3 * jax.random.normal(ks[4], (planes // 16, planes), jnp.float32),
        "w_fc2": 0.3 * jax.random.normal(ks[5], (planes, planes // 16), jnp.float32),
        "w_sa": 0.3 * jax.random.normal(ks[6], (1, 2, 7), jnp.float32),
    }
    x = jax.random.normal(ks[7], (batch, 3 * L), jnp.float32)

    out = jax.block_until_ready(base_block1_forward(x, params, planes, strides))
    ref = jax.block_until_ready(base_block1_reference(x, params, planes, strides))

    np.testing.assert_allclose(np.asarray(out), np.asarray(ref), rtol=2e-3, atol=2e-3)
    print("KERNEL_OK")
</pallas_src>

<mosaic_0001>
module attributes {stable_mosaic.version = 11 : i64} {
  func.func @_base_block1_kernel(%arg0: memref<2x3x16xf32, #tpu.memory_space<vmem>>, %arg1: memref<9x32x1xf32, #tpu.memory_space<vmem>>, %arg2: memref<32x1xf32, #tpu.memory_space<vmem>>, %arg3: memref<32x1xf32, #tpu.memory_space<vmem>>, %arg4: memref<32x1xf32, #tpu.memory_space<vmem>>, %arg5: memref<2x32xf32, #tpu.memory_space<vmem>>, %arg6: memref<32x2xf32, #tpu.memory_space<vmem>>, %arg7: memref<2x7xf32, #tpu.memory_space<smem>>, %arg8: memref<2x32x14xf32, #tpu.memory_space<vmem>>) attributes {dimension_semantics = [], scalar_prefetch = 0 : i64, scratch_operands = 0 : i64, tpu.core_type = #tpu.core_type<tc>} {
    %c0 = arith.constant 0 : index
    %c0_0 = arith.constant 0 : index
    %c0_1 = arith.constant 0 : index
    %0 = vector.load %arg0[%c0, %c0_0, %c0_1] : memref<2x3x16xf32, #tpu.memory_space<vmem>>, vector<2x3x16xf32>
    %c0_2 = arith.constant 0 : index
    %c0_3 = arith.constant 0 : index
    %c0_4 = arith.constant 0 : index
    %1 = vector.load %arg1[%c0_2, %c0_3, %c0_4] : memref<9x32x1xf32, #tpu.memory_space<vmem>>, vector<9x32x1xf32>
    %c0_5 = arith.constant 0 : index
    %c0_6 = arith.constant 0 : index
    %2 = vector.load %arg2[%c0_5, %c0_6] : memref<32x1xf32, #tpu.memory_space<vmem>>, vector<32x1xf32>
    %3 = vector.shape_cast %2 : vector<32x1xf32> to vector<1x32x1xf32>
    %4 = vector.shape_cast %3 : vector<1x32x1xf32> to vector<1x32x1xf32>
    %5 = vector.broadcast %4 : vector<1x32x1xf32> to vector<2x32x14xf32>
    %6 = vector.extract_strided_slice %0 {offsets = [0, 0, 0], sizes = [2, 1, 14], strides = [1, 1, 1]} : vector<2x3x16xf32> to vector<2x1x14xf32>
    %7 = vector.shape_cast %6 : vector<2x1x14xf32> to vector<2x14xf32>
    %8 = vector.shape_cast %7 : vector<2x14xf32> to vector<2x1x14xf32>
    %9 = vector.extract_strided_slice %1 {offsets = [0, 0, 0], sizes = [1, 32, 1], strides = [1, 1, 1]} : vector<9x32x1xf32> to vector<1x32x1xf32>
    %10 = vector.shape_cast %9 : vector<1x32x1xf32> to vector<32x1xf32>
    %11 = vector.shape_cast %10 : vector<32x1xf32> to vector<1x32x1xf32>
    %12 = vector.broadcast %8 : vector<2x1x14xf32> to vector<2x32x14xf32>
    %13 = vector.broadcast %11 : vector<1x32x1xf32> to vector<2x32x14xf32>
    %14 = arith.mulf %12, %13 : vector<2x32x14xf32>
    %15 = arith.addf %5, %14 : vector<2x32x14xf32>
    %16 = vector.extract_strided_slice %0 {offsets = [0, 1, 0], sizes = [2, 1, 14], strides = [1, 1, 1]} : vector<2x3x16xf32> to vector<2x1x14xf32>
    %17 = vector.shape_cast %16 : vector<2x1x14xf32> to vector<2x14xf32>
    %18 = vector.shape_cast %17 : vector<2x14xf32> to vector<2x1x14xf32>
    %19 = vector.extract_strided_slice %1 {offsets = [1, 0, 0], sizes = [1, 32, 1], strides = [1, 1, 1]} : vector<9x32x1xf32> to vector<1x32x1xf32>
    %20 = vector.shape_cast %19 : vector<1x32x1xf32> to vector<32x1xf32>
    %21 = vector.shape_cast %20 : vector<32x1xf32> to vector<1x32x1xf32>
    %22 = vector.broadcast %18 : vector<2x1x14xf32> to vector<2x32x14xf32>
    %23 = vector.broadcast %21 : vector<1x32x1xf32> to vector<2x32x14xf32>
    %24 = arith.mulf %22, %23 : vector<2x32x14xf32>
    %25 = arith.addf %15, %24 : vector<2x32x14xf32>
    %26 = vector.extract_strided_slice %0 {offsets = [0, 2, 0], sizes = [2, 1, 14], strides = [1, 1, 1]} : vector<2x3x16xf32> to vector<2x1x14xf32>
    %27 = vector.shape_cast %26 : vector<2x1x14xf32> to vector<2x14xf32>
    %28 = vector.shape_cast %27 : vector<2x14xf32> to vector<2x1x14xf32>
    %29 = vector.extract_strided_slice %1 {offsets = [2, 0, 0], sizes = [1, 32, 1], strides = [1, 1, 1]} : vector<9x32x1xf32> to vector<1x32x1xf32>
    %30 = vector.shape_cast %29 : vector<1x32x1xf32> to vector<32x1xf32>
    %31 = vector.shape_cast %30 : vector<32x1xf32> to vector<1x32x1xf32>
    %32 = vector.broadcast %28 : vector<2x1x14xf32> to vector<2x32x14xf32>
    %33 = vector.broadcast %31 : vector<1x32x1xf32> to vector<2x32x14xf32>
    %34 = arith.mulf %32, %33 : vector<2x32x14xf32>
    %35 = arith.addf %25, %34 : vector<2x32x14xf32>
    %36 = vector.extract_strided_slice %0 {offsets = [0, 0, 1], sizes = [2, 1, 14], strides = [1, 1, 1]} : vector<2x3x16xf32> to vector<2x1x14xf32>
    %37 = vector.shape_cast %36 : vector<2x1x14xf32> to vector<2x14xf32>
    %38 = vector.shape_cast %37 : vector<2x14xf32> to vector<2x1x14xf32>
    %39 = vector.extract_strided_slice %1 {offsets = [3, 0, 0], sizes = [1, 32, 1], strides = [1, 1, 1]} : vector<9x32x1xf32> to vector<1x32x1xf32>
    %40 = vector.shape_cast %39 : vector<1x32x1xf32> to vector<32x1xf32>
    %41 = vector.shape_cast %40 : vector<32x1xf32> to vector<1x32x1xf32>
    %42 = vector.broadcast %38 : vector<2x1x14xf32> to vector<2x32x14xf32>
    %43 = vector.broadcast %41 : vector<1x32x1xf32> to vector<2x32x14xf32>
    %44 = arith.mulf %42, %43 : vector<2x32x14xf32>
    %45 = arith.addf %35, %44 : vector<2x32x14xf32>
    %46 = vector.extract_strided_slice %0 {offsets = [0, 1, 1], sizes = [2, 1, 14], strides = [1, 1, 1]} : vector<2x3x16xf32> to vector<2x1x14xf32>
    %47 = vector.shape_cast %46 : vector<2x1x14xf32> to vector<2x14xf32>
    %48 = vector.shape_cast %47 : vector<2x14xf32> to vector<2x1x14xf32>
    %49 = vector.extract_strided_slice %1 {offsets = [4, 0, 0], sizes = [1, 32, 1], strides = [1, 1, 1]} : vector<9x32x1xf32> to vector<1x32x1xf32>
    %50 = vector.shape_cast %49 : vector<1x32x1xf32> to vector<32x1xf32>
    %51 = vector.shape_cast %50 : vector<32x1xf32> to vector<1x32x1xf32>
    %52 = vector.broadcast %48 : vector<2x1x14xf32> to vector<2x32x14xf32>
    %53 = vector.broadcast %51 : vector<1x32x1xf32> to vector<2x32x14xf32>
    %54 = arith.mulf %52, %53 : vector<2x32x14xf32>
    %55 = arith.addf %45, %54 : vector<2x32x14xf32>
    %56 = vector.extract_strided_slice %0 {offsets = [0, 2, 1], sizes = [2, 1, 14], strides = [1, 1, 1]} : vector<2x3x16xf32> to vector<2x1x14xf32>
    %57 = vector.shape_cast %56 : vector<2x1x14xf32> to vector<2x14xf32>
    %58 = vector.shape_cast %57 : vector<2x14xf32> to vector<2x1x14xf32>
    %59 = vector.extract_strided_slice %1 {offsets = [5, 0, 0], sizes = [1, 32, 1], strides = [1, 1, 1]} : vector<9x32x1xf32> to vector<1x32x1xf32>
    %60 = vector.shape_cast %59 : vector<1x32x1xf32> to vector<32x1xf32>
    %61 = vector.shape_cast %60 : vector<32x1xf32> to vector<1x32x1xf32>
    %62 = vector.broadcast %58 : vector<2x1x14xf32> to vector<2x32x14xf32>
    %63 = vector.broadcast %61 : vector<1x32x1xf32> to vector<2x32x14xf32>
    %64 = arith.mulf %62, %63 : vector<2x32x14xf32>
    %65 = arith.addf %55, %64 : vector<2x32x14xf32>
    %66 = vector.extract_strided_slice %0 {offsets = [0, 0, 2], sizes = [2, 1, 14], strides = [1, 1, 1]} : vector<2x3x16xf32> to vector<2x1x14xf32>
    %67 = vector.shape_cast %66 : vector<2x1x14xf32> to vector<2x14xf32>
    %68 = vector.shape_cast %67 : vector<2x14xf32> to vector<2x1x14xf32>
    %69 = vector.extract_strided_slice %1 {offsets = [6, 0, 0], sizes = [1, 32, 1], strides = [1, 1, 1]} : vector<9x32x1xf32> to vector<1x32x1xf32>
    %70 = vector.shape_cast %69 : vector<1x32x1xf32> to vector<32x1xf32>
    %71 = vector.shape_cast %70 : vector<32x1xf32> to vector<1x32x1xf32>
    %72 = vector.broadcast %68 : vector<2x1x14xf32> to vector<2x32x14xf32>
    %73 = vector.broadcast %71 : vector<1x32x1xf32> to vector<2x32x14xf32>
    %74 = arith.mulf %72, %73 : vector<2x32x14xf32>
    %75 = arith.addf %65, %74 : vector<2x32x14xf32>
    %76 = vector.extract_strided_slice %0 {offsets = [0, 1, 2], sizes = [2, 1, 14], strides = [1, 1, 1]} : vector<2x3x16xf32> to vector<2x1x14xf32>
    %77 = vector.shape_cast %76 : vector<2x1x14xf32> to vector<2x14xf32>
    %78 = vector.shape_cast %77 : vector<2x14xf32> to vector<2x1x14xf32>
    %79 = vector.extract_strided_slice %1 {offsets = [7, 0, 0], sizes = [1, 32, 1], strides = [1, 1, 1]} : vector<9x32x1xf32> to vector<1x32x1xf32>
    %80 = vector.shape_cast %79 : vector<1x32x1xf32> to vector<32x1xf32>
    %81 = vector.shape_cast %80 : vector<32x1xf32> to vector<1x32x1xf32>
    %82 = vector.broadcast %78 : vector<2x1x14xf32> to vector<2x32x14xf32>
    %83 = vector.broadcast %81 : vector<1x32x1xf32> to vector<2x32x14xf32>
    %84 = arith.mulf %82, %83 : vector<2x32x14xf32>
    %85 = arith.addf %75, %84 : vector<2x32x14xf32>
    %86 = vector.extract_strided_slice %0 {offsets = [0, 2, 2], sizes = [2, 1, 14], strides = [1, 1, 1]} : vector<2x3x16xf32> to vector<2x1x14xf32>
    %87 = vector.shape_cast %86 : vector<2x1x14xf32> to vector<2x14xf32>
    %88 = vector.shape_cast %87 : vector<2x14xf32> to vector<2x1x14xf32>
    %89 = vector.extract_strided_slice %1 {offsets = [8, 0, 0], sizes = [1, 32, 1], strides = [1, 1, 1]} : vector<9x32x1xf32> to vector<1x32x1xf32>
    %90 = vector.shape_cast %89 : vector<1x32x1xf32> to vector<32x1xf32>
    %91 = vector.shape_cast %90 : vector<32x1xf32> to vector<1x32x1xf32>
    %92 = vector.broadcast %88 : vector<2x1x14xf32> to vector<2x32x14xf32>
    %93 = vector.broadcast %91 : vector<1x32x1xf32> to vector<2x32x14xf32>
    %94 = arith.mulf %92, %93 : vector<2x32x14xf32>
    %95 = arith.addf %85, %94 : vector<2x32x14xf32>
    %cst = arith.constant dense<0.000000e+00> : vector<2x32xf32>
    %96 = vector.multi_reduction <add>, %95, %cst [2] : vector<2x32x14xf32> to vector<2x32xf32>
    %97 = vector.shape_cast %96 : vector<2x32xf32> to vector<2x32x1xf32>
    %cst_7 = arith.constant dense<0.000000e+00> : vector<32x1xf32>
    %98 = vector.multi_reduction <add>, %97, %cst_7 [0] : vector<2x32x1xf32> to vector<32x1xf32>
    %99 = vector.shape_cast %98 : vector<32x1xf32> to vector<1x32x1xf32>
    %cst_8 = arith.constant 0.0357142873 : f32
    %100 = vector.broadcast %cst_8 : f32 to vector<1x32x1xf32>
    %101 = arith.mulf %99, %100 : vector<1x32x1xf32>
    %102 = vector.broadcast %101 : vector<1x32x1xf32> to vector<2x32x14xf32>
    %103 = arith.subf %95, %102 : vector<2x32x14xf32>
    %104 = arith.mulf %103, %103 : vector<2x32x14xf32>
    %cst_9 = arith.constant dense<0.000000e+00> : vector<2x32xf32>
    %105 = vector.multi_reduction <add>, %104, %cst_9 [2] : vector<2x32x14xf32> to vector<2x32xf32>
    %106 = vector.shape_cast %105 : vector<2x32xf32> to vector<2x32x1xf32>
    %cst_10 = arith.constant dense<0.000000e+00> : vector<32x1xf32>
    %107 = vector.multi_reduction <add>, %106, %cst_10 [0] : vector<2x32x1xf32> to vector<32x1xf32>
    %108 = vector.shape_cast %107 : vector<32x1xf32> to vector<1x32x1xf32>
    %cst_11 = arith.constant 0.0357142873 : f32
    %109 = vector.broadcast %cst_11 : f32 to vector<1x32x1xf32>
    %110 = arith.mulf %108, %109 : vector<1x32x1xf32>
    %c0_12 = arith.constant 0 : index
    %c0_13 = arith.constant 0 : index
    %111 = vector.load %arg3[%c0_12, %c0_13] : memref<32x1xf32, #tpu.memory_space<vmem>>, vector<32x1xf32>
    %112 = vector.shape_cast %111 : vector<32x1xf32> to vector<1x32x1xf32>
    %cst_14 = arith.constant 9.99999974E-6 : f32
    %113 = vector.broadcast %cst_14 : f32 to vector<1x32x1xf32>
    %114 = arith.addf %110, %113 : vector<1x32x1xf32>
    %115 = math.rsqrt %114 : vector<1x32x1xf32>
    %116 = arith.mulf %112, %115 : vector<1x32x1xf32>
    %117 = vector.broadcast %116 : vector<1x32x1xf32> to vector<2x32x14xf32>
    %118 = arith.mulf %103, %117 : vector<2x32x14xf32>
    %c0_15 = arith.constant 0 : index
    %c0_16 = arith.constant 0 : index
    %119 = vector.load %arg4[%c0_15, %c0_16] : memref<32x1xf32, #tpu.memory_space<vmem>>, vector<32x1xf32>
    %120 = vector.shape_cast %119 : vector<32x1xf32> to vector<1x32x1xf32>
    %121 = vector.broadcast %120 : vector<1x32x1xf32> to vector<2x32x14xf32>
    %122 = arith.addf %118, %121 : vector<2x32x14xf32>
    %cst_17 = arith.constant 0.000000e+00 : f32
    %123 = vector.broadcast %cst_17 : f32 to vector<2x32x14xf32>
    %124 = arith.maximumf %122, %123 : vector<2x32x14xf32>
    %cst_18 = arith.constant dense<0.000000e+00> : vector<2x32xf32>
    %125 = vector.multi_reduction <add>, %124, %cst_18 [2] : vector<2x32x14xf32> to vector<2x32xf32>
    %126 = vector.shape_cast %125 : vector<2x32xf32> to vector<2x32x1xf32>
    %cst_19 = arith.constant 1.400000e+01 : f32
    %127 = vector.broadcast %cst_19 : f32 to vector<2x32x1xf32>
    %128 = arith.divf %126, %127 : vector<2x32x1xf32>
    %cst_20 = arith.constant dense<0xFF800000> : vector<2x32xf32>
    %129 = vector.multi_reduction <maximumf>, %124, %cst_20 [2] : vector<2x32x14xf32> to vector<2x32xf32>
    %130 = vector.shape_cast %129 : vector<2x32xf32> to vector<2x32x1xf32>
    %131 = vector.extract_strided_slice %128 {offsets = [0, 0, 0], sizes = [1, 32, 1], strides = [1, 1, 1]} : vector<2x32x1xf32> to vector<1x32x1xf32>
    %132 = vector.shape_cast %131 : vector<1x32x1xf32> to vector<32x1xf32>
    %133 = vector.extract_strided_slice %128 {offsets = [1, 0, 0], sizes = [1, 32, 1], strides = [1, 1, 1]} : vector<2x32x1xf32> to vector<1x32x1xf32>
    %134 = vector.shape_cast %133 : vector<1x32x1xf32> to vector<32x1xf32>
    %135 = vector.extract_strided_slice %130 {offsets = [0, 0, 0], sizes = [1, 32, 1], strides = [1, 1, 1]} : vector<2x32x1xf32> to vector<1x32x1xf32>
    %136 = vector.shape_cast %135 : vector<1x32x1xf32> to vector<32x1xf32>
    %137 = vector.extract_strided_slice %130 {offsets = [1, 0, 0], sizes = [1, 32, 1], strides = [1, 1, 1]} : vector<2x32x1xf32> to vector<1x32x1xf32>
    %138 = vector.shape_cast %137 : vector<1x32x1xf32> to vector<32x1xf32>
    %139 = tpu.concatenate %132, %134, %136, %138 in 1 : vector<32x1xf32>, vector<32x1xf32>, vector<32x1xf32>, vector<32x1xf32> -> vector<32x4xf32>
    %c0_21 = arith.constant 0 : index
    %c0_22 = arith.constant 0 : index
    %140 = vector.load %arg5[%c0_21, %c0_22] : memref<2x32xf32, #tpu.memory_space<vmem>>, vector<2x32xf32>
    %cst_23 = arith.constant dense<0.000000e+00> : vector<2x4xf32>
    %141 = tpu.matmul %140, %139, %cst_23 {dimension_numbers = #tpu.dot_dimension_numbers<[1], [0], [0], [1], [0, 0, 1, 1], [], []>} : vector<2x32xf32>, vector<32x4xf32>, vector<2x4xf32> -> vector<2x4xf32>
    %cst_24 = arith.constant 0.000000e+00 : f32
    %142 = vector.broadcast %cst_24 : f32 to vector<2x4xf32>
    %143 = arith.maximumf %141, %142 : vector<2x4xf32>
    %c0_25 = arith.constant 0 : index
    %c0_26 = arith.constant 0 : index
    %144 = vector.load %arg6[%c0_25, %c0_26] : memref<32x2xf32, #tpu.memory_space<vmem>>, vector<32x2xf32>
    %cst_27 = arith.constant dense<0.000000e+00> : vector<32x4xf32>
    %145 = tpu.matmul %144, %143, %cst_27 {dimension_numbers = #tpu.dot_dimension_numbers<[1], [0], [0], [1], [0, 0, 1, 1], [], []>} : vector<32x2xf32>, vector<2x4xf32>, vector<32x4xf32> -> vector<32x4xf32>
    %146 = vector.extract_strided_slice %145 {offsets = [0, 0], sizes = [32, 1], strides = [1, 1]} : vector<32x4xf32> to vector<32x1xf32>
    %147 = vector.extract_strided_slice %145 {offsets = [0, 2], sizes = [32, 1], strides = [1, 1]} : vector<32x4xf32> to vector<32x1xf32>
    %148 = arith.addf %146, %147 : vector<32x1xf32>
    %149 = vector.extract_strided_slice %145 {offsets = [0, 1], sizes = [32, 1], strides = [1, 1]} : vector<32x4xf32> to vector<32x1xf32>
    %150 = vector.extract_strided_slice %145 {offsets = [0, 3], sizes = [32, 1], strides = [1, 1]} : vector<32x4xf32> to vector<32x1xf32>
    %151 = arith.addf %149, %150 : vector<32x1xf32>
    %152 = vector.shape_cast %148 : vector<32x1xf32> to vector<1x32x1xf32>
    %153 = vector.shape_cast %151 : vector<32x1xf32> to vector<1x32x1xf32>
    %154 = tpu.concatenate %152, %153 in 0 : vector<1x32x1xf32>, vector<1x32x1xf32> -> vector<2x32x1xf32>
    %cst_28 = arith.constant 5.000000e-01 : f32
    %155 = vector.broadcast %cst_28 : f32 to vector<2x32x1xf32>
    %156 = arith.mulf %155, %154 : vector<2x32x1xf32>
    %157 = math.tanh %156 : vector<2x32x1xf32>
    %cst_29 = arith.constant 5.000000e-01 : f32
    %158 = vector.broadcast %cst_29 : f32 to vector<2x32x1xf32>
    %159 = arith.mulf %158, %157 : vector<2x32x1xf32>
    %cst_30 = arith.constant 5.000000e-01 : f32
    %160 = vector.broadcast %cst_30 : f32 to vector<2x32x1xf32>
    %161 = arith.addf %159, %160 : vector<2x32x1xf32>
    %162 = vector.broadcast %161 : vector<2x32x1xf32> to vector<2x32x14xf32>
    %163 = arith.mulf %124, %162 : vector<2x32x14xf32>
    %cst_31 = arith.constant dense<0.000000e+00> : vector<2x14xf32>
    %164 = vector.multi_reduction <add>, %163, %cst_31 [1] : vector<2x32x14xf32> to vector<2x14xf32>
    %165 = vector.shape_cast %164 : vector<2x14xf32> to vector<2x1x14xf32>
    %cst_32 = arith.constant 3.200000e+01 : f32
    %166 = vector.broadcast %cst_32 : f32 to vector<2x1x14xf32>
    %167 = arith.divf %165, %166 : vector<2x1x14xf32>
    %cst_33 = arith.constant dense<0xFF800000> : vector<2x14xf32>
    %168 = vector.multi_reduction <maximumf>, %163, %cst_33 [1] : vector<2x32x14xf32> to vector<2x14xf32>
    %169 = vector.shape_cast %168 : vector<2x14xf32> to vector<2x1x14xf32>
    %cst_34 = arith.constant 0.000000e+00 : f32
    %170 = vector.broadcast %cst_34 : f32 to vector<2x1x3xf32>
    %171 = tpu.concatenate %170, %167, %170 in 2 : vector<2x1x3xf32>, vector<2x1x14xf32>, vector<2x1x3xf32> -> vector<2x1x20xf32>
    %172 = tpu.concatenate %170, %169, %170 in 2 : vector<2x1x3xf32>, vector<2x1x14xf32>, vector<2x1x3xf32> -> vector<2x1x20xf32>
    %cst_35 = arith.constant 0.000000e+00 : f32
    %173 = vector.broadcast %cst_35 : f32 to vector<2x1x14xf32>
    %c0_36 = arith.constant 0 : index
    %c0_37 = arith.constant 0 : index
    %174 = memref.load %arg7[%c0_36, %c0_37] : memref<2x7xf32, #tpu.memory_space<smem>>
    %175 = vector.extract_strided_slice %171 {offsets = [0, 0, 0], sizes = [2, 1, 14], strides = [1, 1, 1]} : vector<2x1x20xf32> to vector<2x1x14xf32>
    %176 = vector.broadcast %174 : f32 to vector<2x1x14xf32>
    %177 = arith.mulf %176, %175 : vector<2x1x14xf32>
    %178 = arith.addf %173, %177 : vector<2x1x14xf32>
    %c1 = arith.constant 1 : index
    %c0_38 = arith.constant 0 : index
    %179 = memref.load %arg7[%c1, %c0_38] : memref<2x7xf32, #tpu.memory_space<smem>>
    %180 = vector.extract_strided_slice %172 {offsets = [0, 0, 0], sizes = [2, 1, 14], strides = [1, 1, 1]} : vector<2x1x20xf32> to vector<2x1x14xf32>
    %181 = vector.broadcast %179 : f32 to vector<2x1x14xf32>
    %182 = arith.mulf %181, %180 : vector<2x1x14xf32>
    %183 = arith.addf %178, %182 : vector<2x1x14xf32>
    %c0_39 = arith.constant 0 : index
    %c1_40 = arith.constant 1 : index
    %184 = memref.load %arg7[%c0_39, %c1_40] : memref<2x7xf32, #tpu.memory_space<smem>>
    %185 = vector.extract_strided_slice %171 {offsets = [0, 0, 1], sizes = [2, 1, 14], strides = [1, 1, 1]} : vector<2x1x20xf32> to vector<2x1x14xf32>
    %186 = vector.broadcast %184 : f32 to vector<2x1x14xf32>
    %187 = arith.mulf %186, %185 : vector<2x1x14xf32>
    %188 = arith.addf %183, %187 : vector<2x1x14xf32>
    %c1_41 = arith.constant 1 : index
    %c1_42 = arith.constant 1 : index
    %189 = memref.load %arg7[%c1_41, %c1_42] : memref<2x7xf32, #tpu.memory_space<smem>>
    %190 = vector.extract_strided_slice %172 {offsets = [0, 0, 1], sizes = [2, 1, 14], strides = [1, 1, 1]} : vector<2x1x20xf32> to vector<2x1x14xf32>
    %191 = vector.broadcast %189 : f32 to vector<2x1x14xf32>
    %192 = arith.mulf %191, %190 : vector<2x1x14xf32>
    %193 = arith.addf %188, %192 : vector<2x1x14xf32>
    %c0_43 = arith.constant 0 : index
    %c2 = arith.constant 2 : index
    %194 = memref.load %arg7[%c0_43, %c2] : memref<2x7xf32, #tpu.memory_space<smem>>
    %195 = vector.extract_strided_slice %171 {offsets = [0, 0, 2], sizes = [2, 1, 14], strides = [1, 1, 1]} : vector<2x1x20xf32> to vector<2x1x14xf32>
    %196 = vector.broadcast %194 : f32 to vector<2x1x14xf32>
    %197 = arith.mulf %196, %195 : vector<2x1x14xf32>
    %198 = arith.addf %193, %197 : vector<2x1x14xf32>
    %c1_44 = arith.constant 1 : index
    %c2_45 = arith.constant 2 : index
    %199 = memref.load %arg7[%c1_44, %c2_45] : memref<2x7xf32, #tpu.memory_space<smem>>
    %200 = vector.extract_strided_slice %172 {offsets = [0, 0, 2], sizes = [2, 1, 14], strides = [1, 1, 1]} : vector<2x1x20xf32> to vector<2x1x14xf32>
    %201 = vector.broadcast %199 : f32 to vector<2x1x14xf32>
    %202 = arith.mulf %201, %200 : vector<2x1x14xf32>
    %203 = arith.addf %198, %202 : vector<2x1x14xf32>
    %c0_46 = arith.constant 0 : index
    %c3 = arith.constant 3 : index
    %204 = memref.load %arg7[%c0_46, %c3] : memref<2x7xf32, #tpu.memory_space<smem>>
    %205 = vector.extract_strided_slice %171 {offsets = [0, 0, 3], sizes = [2, 1, 14], strides = [1, 1, 1]} : vector<2x1x20xf32> to vector<2x1x14xf32>
    %206 = vector.broadcast %204 : f32 to vector<2x1x14xf32>
    %207 = arith.mulf %206, %205 : vector<2x1x14xf32>
    %208 = arith.addf %203, %207 : vector<2x1x14xf32>
    %c1_47 = arith.constant 1 : index
    %c3_48 = arith.constant 3 : index
    %209 = memref.load %arg7[%c1_47, %c3_48] : memref<2x7xf32, #tpu.memory_space<smem>>
    %210 = vector.extract_strided_slice %172 {offsets = [0, 0, 3], sizes = [2, 1, 14], strides = [1, 1, 1]} : vector<2x1x20xf32> to vector<2x1x14xf32>
    %211 = vector.broadcast %209 : f32 to vector<2x1x14xf32>
    %212 = arith.mulf %211, %210 : vector<2x1x14xf32>
    %213 = arith.addf %208, %212 : vector<2x1x14xf32>
    %c0_49 = arith.constant 0 : index
    %c4 = arith.constant 4 : index
    %214 = memref.load %arg7[%c0_49, %c4] : memref<2x7xf32, #tpu.memory_space<smem>>
    %215 = vector.extract_strided_slice %171 {offsets = [0, 0, 4], sizes = [2, 1, 14], strides = [1, 1, 1]} : vector<2x1x20xf32> to vector<2x1x14xf32>
    %216 = vector.broadcast %214 : f32 to vector<2x1x14xf32>
    %217 = arith.mulf %216, %215 : vector<2x1x14xf32>
    %218 = arith.addf %213, %217 : vector<2x1x14xf32>
    %c1_50 = arith.constant 1 : index
    %c4_51 = arith.constant 4 : index
    %219 = memref.load %arg7[%c1_50, %c4_51] : memref<2x7xf32, #tpu.memory_space<smem>>
    %220 = vector.extract_strided_slice %172 {offsets = [0, 0, 4], sizes = [2, 1, 14], strides = [1, 1, 1]} : vector<2x1x20xf32> to vector<2x1x14xf32>
    %221 = vector.broadcast %219 : f32 to vector<2x1x14xf32>
    %222 = arith.mulf %221, %220 : vector<2x1x14xf32>
    %223 = arith.addf %218, %222 : vector<2x1x14xf32>
    %c0_52 = arith.constant 0 : index
    %c5 = arith.constant 5 : index
    %224 = memref.load %arg7[%c0_52, %c5] : memref<2x7xf32, #tpu.memory_space<smem>>
    %225 = vector.extract_strided_slice %171 {offsets = [0, 0, 5], sizes = [2, 1, 14], strides = [1, 1, 1]} : vector<2x1x20xf32> to vector<2x1x14xf32>
    %226 = vector.broadcast %224 : f32 to vector<2x1x14xf32>
    %227 = arith.mulf %226, %225 : vector<2x1x14xf32>
    %228 = arith.addf %223, %227 : vector<2x1x14xf32>
    %c1_53 = arith.constant 1 : index
    %c5_54 = arith.constant 5 : index
    %229 = memref.load %arg7[%c1_53, %c5_54] : memref<2x7xf32, #tpu.memory_space<smem>>
    %230 = vector.extract_strided_slice %172 {offsets = [0, 0, 5], sizes = [2, 1, 14], strides = [1, 1, 1]} : vector<2x1x20xf32> to vector<2x1x14xf32>
    %231 = vector.broadcast %229 : f32 to vector<2x1x14xf32>
    %232 = arith.mulf %231, %230 : vector<2x1x14xf32>
    %233 = arith.addf %228, %232 : vector<2x1x14xf32>
    %c0_55 = arith.constant 0 : index
    %c6 = arith.constant 6 : index
    %234 = memref.load %arg7[%c0_55, %c6] : memref<2x7xf32, #tpu.memory_space<smem>>
    %235 = vector.extract_strided_slice %171 {offsets = [0, 0, 6], sizes = [2, 1, 14], strides = [1, 1, 1]} : vector<2x1x20xf32> to vector<2x1x14xf32>
    %236 = vector.broadcast %234 : f32 to vector<2x1x14xf32>
    %237 = arith.mulf %236, %235 : vector<2x1x14xf32>
    %238 = arith.addf %233, %237 : vector<2x1x14xf32>
    %c1_56 = arith.constant 1 : index
    %c6_57 = arith.constant 6 : index
    %239 = memref.load %arg7[%c1_56, %c6_57] : memref<2x7xf32, #tpu.memory_space<smem>>
    %240 = vector.extract_strided_slice %172 {offsets = [0, 0, 6], sizes = [2, 1, 14], strides = [1, 1, 1]} : vector<2x1x20xf32> to vector<2x1x14xf32>
    %241 = vector.broadcast %239 : f32 to vector<2x1x14xf32>
    %242 = arith.mulf %241, %240 : vector<2x1x14xf32>
    %243 = arith.addf %238, %242 : vector<2x1x14xf32>
    %cst_58 = arith.constant 5.000000e-01 : f32
    %244 = vector.broadcast %cst_58 : f32 to vector<2x1x14xf32>
    %245 = arith.mulf %244, %243 : vector<2x1x14xf32>
    %246 = math.tanh %245 : vector<2x1x14xf32>
    %cst_59 = arith.constant 5.000000e-01 : f32
    %247 = vector.broadcast %cst_59 : f32 to vector<2x1x14xf32>
    %248 = arith.mulf %247, %246 : vector<2x1x14xf32>
    %cst_60 = arith.constant 5.000000e-01 : f32
    %249 = vector.broadcast %cst_60 : f32 to vector<2x1x14xf32>
    %250 = arith.addf %248, %249 : vector<2x1x14xf32>
    %251 = vector.broadcast %250 : vector<2x1x14xf32> to vector<2x32x14xf32>
    %252 = arith.mulf %163, %251 : vector<2x32x14xf32>
    %c0_61 = arith.constant 0 : index
    %c0_62 = arith.constant 0 : index
    %c0_63 = arith.constant 0 : index
    %253 = vector.load %arg8[%c0_61, %c0_62, %c0_63] : memref<2x32x14xf32, #tpu.memory_space<vmem>>, vector<2x32x14xf32>
    tpu.vector_store %arg8[%c0_61, %c0_62, %c0_63], %252 {strides = array<i32>} : memref<2x32x14xf32, #tpu.memory_space<vmem>>, vector<2x32x14xf32>,
    return
  }
}

</mosaic_0001>

<llo_original>
// kernel: tpu_custom_call.1
$region0: #{tpu_custom_call.1}
  #allocation0 [shape = 'u32[]', space=smem, size = 0x4, offset = 0x4, fixed_abs, tag = 'smem constant byte address 0x4 - core index']
  #allocation1 [shape = 'u32[144,128]{1,0:T(1,128)}', space=vmem, size = 0x12000, scoped, tag = 'internal scratch']
  %s0 = inlined_call_operand.vmem [shape: f32[2,3,16], index: 0, kind: input, shape index: {}]
  %s1 = inlined_call_operand.vmem [shape: f32[9,32,1], index: 1, kind: input, shape index: {}]
  %s2 = inlined_call_operand.vmem [shape: f32[32,1], index: 2, kind: input, shape index: {}]
  %s3 = inlined_call_operand.vmem [shape: f32[32,1], index: 3, kind: input, shape index: {}]
  %s4 = inlined_call_operand.vmem [shape: f32[32,1], index: 4, kind: input, shape index: {}]
  %s5 = inlined_call_operand.vmem [shape: f32[2,32], index: 5, kind: input, shape index: {}]
  %s6 = inlined_call_operand.vmem [shape: f32[32,2], index: 6, kind: input, shape index: {}]
  %s7 = inlined_call_operand.vmem [shape: f32[2,7], index: 7, kind: input, shape index: {}]
  %s8 = inlined_call_operand.vmem [shape: f32[2,32,14], index: 8, kind: output, shape index: {}]
  %s9 = sld [smem:[#allocation0]]
  $region46: #{tpu_custom_call.1} parent=0
    _
  %s11 = ssub.s32 1, %s9
  %s12 = scalar_select 0, %s11, %s9
  $region1: #{tpu_custom_call.1} parent=0
    #allocation2 [shape = 'u8[1024]{0}', space=smem, size = 0x400, scoped, tag = 'input window, operand 7, single buffered']
    #allocation3 [shape = 's32[1]{0}', space=sflag, size = 0x4, scoped, tag = 'scoped memory for tpu_custom_call.1']
    %13 = vsyncpa [#allocation3], 0
    // Predicated region
    $region2: #{tpu_custom_call.1} parent=1 // pred_check
      _
    $region3: #{tpu_custom_call.1} parent=1 // pred_check_branch
      %15 = sbr.rel (0) target = $region5
    $region4: #{tpu_custom_call.1} parent=1 // pred_region
      _
    $region5: #{tpu_custom_call.1} parent=1 // pred_fallthru
      _
    // Predicated region
    $region6: #{tpu_custom_call.1} parent=1 // pred_check
      _
    $region7: #{tpu_custom_call.1} parent=1 // pred_check_branch
      %17 = sbr.rel (0) target = $region9
    $region8: #{tpu_custom_call.1} parent=1 // pred_region
      _
    $region9: #{tpu_custom_call.1} parent=1 // pred_fallthru
      _
    // Predicated region
    $region10: #{tpu_custom_call.1} parent=1 // pred_check
      _
    $region11: #{tpu_custom_call.1} parent=1 // pred_check_branch
      %19 = sbr.rel (0) target = $region13
    $region12: #{tpu_custom_call.1} parent=1 // pred_region
      _
    $region13: #{tpu_custom_call.1} parent=1 // pred_fallthru
      _
    // Predicated region
    $region14: #{tpu_custom_call.1} parent=1 // pred_check
      _
    $region15: #{tpu_custom_call.1} parent=1 // pred_check_branch
      %21 = sbr.rel (0) target = $region17
    $region16: #{tpu_custom_call.1} parent=1 // pred_region
      _
    $region17: #{tpu_custom_call.1} parent=1 // pred_fallthru
      _
    // Predicated region
    $region18: #{tpu_custom_call.1} parent=1 // pred_check
      _
    $region19: #{tpu_custom_call.1} parent=1 // pred_check_branch
      %23 = sbr.rel (0) target = $region21
    $region20: #{tpu_custom_call.1} parent=1 // pred_region
      _
    $region21: #{tpu_custom_call.1} parent=1 // pred_fallthru
      _
    // Predicated region
    $region22: #{tpu_custom_call.1} parent=1 // pred_check
      _
    $region23: #{tpu_custom_call.1} parent=1 // pred_check_branch
      %25 = sbr.rel (0) target = $region25
    $region24: #{tpu_custom_call.1} parent=1 // pred_region
      _
    $region25: #{tpu_custom_call.1} parent=1 // pred_fallthru
      _
    // Predicated region
    $region26: #{tpu_custom_call.1} parent=1 // pred_check
      _
    $region27: #{tpu_custom_call.1} parent=1 // pred_check_branch
      %27 = sbr.rel (0) target = $region29
    $region28: #{tpu_custom_call.1} parent=1 // pred_region
      _
    $region29: #{tpu_custom_call.1} parent=1 // pred_fallthru
      _
    // Predicated region
    $region30: #{tpu_custom_call.1} parent=1 // pred_check
      _
    $region31: #{tpu_custom_call.1} parent=1 // pred_check_branch
      %29 = sbr.rel (0) target = $region33
    $region32: #{tpu_custom_call.1} parent=1 // pred_region
      %s31 = ssub.s32 32, 32
      %32 = vsyncadd [#allocation3], %s31
      %s34 = sshll.u32 %s7, 4
      %s35 = int_to_ptr.vmem [resolvable:$true] %s34
      %37 = dma.vmem_to_smem %s35, 32, [#allocation2], [#allocation3]
    $region33: #{tpu_custom_call.1} parent=1 // pred_fallthru
      _
    // Predicated region
    $region34: #{tpu_custom_call.1} parent=1 // pred_check
      _
    $region35: #{tpu_custom_call.1} parent=1 // pred_check_branch
      %39 = sbr.rel (0) target = $region37
    $region36: #{tpu_custom_call.1} parent=1 // pred_region
      %40 = dma.done [#allocation3], 32
    $region37: #{tpu_custom_call.1} parent=1 // pred_fallthru
      _
    %41 = sfence
    %v42 = vld [vmem:[%s0] sm:$0x7]
    %v43 = vld [vmem:[%s0 + $0x4] sm:$0x7]
    %v44 = vld [vmem:[%s1] sm:$0xff]
    %v45 = vld [vmem:[%s1 + $0x8] sm:$0xff]
    %v46 = vld [vmem:[%s1 + $0x10] sm:$0xff]
    %v47 = vld [vmem:[%s1 + $0x18] sm:$0xff]
    %v48 = vld [vmem:[%s1 + $0x20] sm:$0xff]
    %v49 = vld [vmem:[%s1 + $0x28] sm:$0xff]
    %v50 = vld [vmem:[%s1 + $0x30] sm:$0xff]
    %v51 = vld [vmem:[%s1 + $0x38] sm:$0xff]
    %v52 = vld [vmem:[%s1 + $0x40] sm:$0xff]
    %v53 = vld [vmem:[%s1 + $0x48] sm:$0xff]
    %v54 = vld [vmem:[%s1 + $0x50] sm:$0xff]
    %v55 = vld [vmem:[%s1 + $0x58] sm:$0xff]
    %v56 = vld [vmem:[%s1 + $0x60] sm:$0xff]
    %v57 = vld [vmem:[%s1 + $0x68] sm:$0xff]
    %v58 = vld [vmem:[%s1 + $0x70] sm:$0xff]
    %v59 = vld [vmem:[%s1 + $0x78] sm:$0xff]
    %v60 = vld [vmem:[%s1 + $0x80] sm:$0xff]
    %v61 = vld [vmem:[%s1 + $0x88] sm:$0xff]
    %v62 = vld [vmem:[%s1 + $0x90] sm:$0xff]
    %v63 = vld [vmem:[%s1 + $0x98] sm:$0xff]
    %v64 = vld [vmem:[%s1 + $0xa0] sm:$0xff]
    %v65 = vld [vmem:[%s1 + $0xa8] sm:$0xff]
    %v66 = vld [vmem:[%s1 + $0xb0] sm:$0xff]
    %v67 = vld [vmem:[%s1 + $0xb8] sm:$0xff]
    %v68 = vld [vmem:[%s1 + $0xc0] sm:$0xff]
    %v69 = vld [vmem:[%s1 + $0xc8] sm:$0xff]
    %v70 = vld [vmem:[%s1 + $0xd0] sm:$0xff]
    %v71 = vld [vmem:[%s1 + $0xd8] sm:$0xff]
    %v72 = vld [vmem:[%s1 + $0xe0] sm:$0xff]
    %v73 = vld [vmem:[%s1 + $0xe8] sm:$0xff]
    %v74 = vld [vmem:[%s1 + $0xf0] sm:$0xff]
    %v75 = vld [vmem:[%s1 + $0xf8] sm:$0xff]
    %v76 = vld [vmem:[%s1 + $0x100] sm:$0xff]
    %v77 = vld [vmem:[%s1 + $0x108] sm:$0xff]
    %v78 = vld [vmem:[%s1 + $0x110] sm:$0xff]
    %v79 = vld [vmem:[%s1 + $0x118] sm:$0xff]
    %v80 = vld [vmem:[%s2] sm:$0xff]
    %v81 = vld [vmem:[%s2 + $0x8] sm:$0xff]
    %v82 = vld [vmem:[%s2 + $0x10] sm:$0xff]
    %v83 = vld [vmem:[%s2 + $0x18] sm:$0xff]
    %85 = vset.pattern.permute.xlu0 0
    %86 = vperm.xlu0 %85, %v80
    %v87 = vpop.permute.xlu0 %86
    %90 = vset.pattern.permute.xlu0 0
    %91 = vperm.xlu0 %90, %v81
    %v92 = vpop.permute.xlu0 %91
    %95 = vset.pattern.permute.xlu0 0
    %96 = vperm.xlu0 %95, %v82
    %v97 = vpop.permute.xlu0 %96
    %100 = vset.pattern.permute.xlu0 0
    %101 = vperm.xlu0 %100, %v83
    %v102 = vpop.permute.xlu0 %101
    %v104 = vlaneseq
    %v105 = vshrl.u32 %v104, 7
    %v106 = vsub.s32 0, %v105
    %v107 = vrot.slane %v42, %v106
    %v108 = vlaneseq
    %v109 = vshrl.u32 %v108, 7
    %v110 = vsub.s32 0, %v109
    %v111 = vrot.slane %v43, %v110
    %113 = vset.pattern.permute.xlu0 0
    %114 = vperm.xlu0 %113, %v44
    %v115 = vpop.permute.xlu0 %114
    %118 = vset.pattern.permute.xlu0 0
    %119 = vperm.xlu0 %118, %v45
    %v120 = vpop.permute.xlu0 %119
    %123 = vset.pattern.permute.xlu0 0
    %124 = vperm.xlu0 %123, %v46
    %v125 = vpop.permute.xlu0 %124
    %128 = vset.pattern.permute.xlu0 0
    %129 = vperm.xlu0 %128, %v47
    %v130 = vpop.permute.xlu0 %129
    %v132 = vmul.f32 %v107, %v115
    %v133 = vmul.f32 %v107, %v120
    %v134 = vmul.f32 %v107, %v125
    %v135 = vmul.f32 %v107, %v130
    %v136 = vmul.f32 %v111, %v115
    %v137 = vmul.f32 %v111, %v120
    %v138 = vmul.f32 %v111, %v125
    %v139 = vmul.f32 %v111, %v130
    %v140 = vadd.f32 %v87, %v132
    %v141 = vadd.f32 %v92, %v133
    %v142 = vadd.f32 %v97, %v134
    %v143 = vadd.f32 %v102, %v135
    %v144 = vadd.f32 %v87, %v136
    %v145 = vadd.f32 %v92, %v137
    %v146 = vadd.f32 %v97, %v138
    %v147 = vadd.f32 %v102, %v139
    %v148 = vlaneseq
    %v149 = vshrl.u32 %v148, 7
    %v150 = vsub.s32 1, %v149
    %v151 = vrot.slane %v42, %v150
    %v152 = vlaneseq
    %v153 = vshrl.u32 %v152, 7
    %v154 = vsub.s32 1, %v153
    %v155 = vrot.slane %v43, %v154
    %157 = vset.pattern.permute.xlu0 0
    %158 = vperm.xlu0 %157, %v48
    %v159 = vpop.permute.xlu0 %158
    %162 = vset.pattern.permute.xlu0 0
    %163 = vperm.xlu0 %162, %v49
    %v164 = vpop.permute.xlu0 %163
    %167 = vset.pattern.permute.xlu0 0
    %168 = vperm.xlu0 %167, %v50
    %v169 = vpop.permute.xlu0 %168
    %172 = vset.pattern.permute.xlu0 0
    %173 = vperm.xlu0 %172, %v51
    %v174 = vpop.permute.xlu0 %173
    %v176 = vmul.f32 %v151, %v159
    %v177 = vmul.f32 %v151, %v164
    %v178 = vmul.f32 %v151, %v169
    %v179 = vmul.f32 %v151, %v174
    %v180 = vmul.f32 %v155, %v159
    %v181 = vmul.f32 %v155, %v164
    %v182 = vmul.f32 %v155, %v169
    %v183 = vmul.f32 %v155, %v174
    %v184 = vadd.f32 %v140, %v176
    %v185 = vadd.f32 %v141, %v177
    %v186 = vadd.f32 %v142, %v178
    %v187 = vadd.f32 %v143, %v179
    %v188 = vadd.f32 %v144, %v180
    %v189 = vadd.f32 %v145, %v181
    %v190 = vadd.f32 %v146, %v182
    %v191 = vadd.f32 %v147, %v183
    %v192 = vlaneseq
    %v193 = vshrl.u32 %v192, 7
    %v194 = vsub.s32 2, %v193
    %v195 = vrot.slane %v42, %v194
    %v196 = vlaneseq
    %v197 = vshrl.u32 %v196, 7
    %v198 = vsub.s32 2, %v197
    %v199 = vrot.slane %v43, %v198
    %201 = vset.pattern.permute.xlu0 0
    %202 = vperm.xlu0 %201, %v52
    %v203 = vpop.permute.xlu0 %202
    %206 = vset.pattern.permute.xlu0 0
    %207 = vperm.xlu0 %206, %v53
    %v208 = vpop.permute.xlu0 %207
    %211 = vset.pattern.permute.xlu0 0
    %212 = vperm.xlu0 %211, %v54
    %v213 = vpop.permute.xlu0 %212
    %216 = vset.pattern.permute.xlu0 0
    %217 = vperm.xlu0 %216, %v55
    %v218 = vpop.permute.xlu0 %217
    %v220 = vmul.f32 %v195, %v203
    %v221 = vmul.f32 %v195, %v208
    %v222 = vmul.f32 %v195, %v213
    %v223 = vmul.f32 %v195, %v218
    %v224 = vmul.f32 %v199, %v203
    %v225 = vmul.f32 %v199, %v208
    %v226 = vmul.f32 %v199, %v213
    %v227 = vmul.f32 %v199, %v218
    %v228 = vadd.f32 %v184, %v220
    %v229 = vadd.f32 %v185, %v221
    %v230 = vadd.f32 %v186, %v222
    %v231 = vadd.f32 %v187, %v223
    %v232 = vadd.f32 %v188, %v224
    %v233 = vadd.f32 %v189, %v225
    %v234 = vadd.f32 %v190, %v226
    %v235 = vadd.f32 %v191, %v227
    %237 = vset.pattern.permute.xlu0 0
    %238 = vperm.xlu0 %237, %v56
    %v239 = vpop.permute.xlu0 %238
    %242 = vset.pattern.permute.xlu0 0
    %243 = vperm.xlu0 %242, %v57
    %v244 = vpop.permute.xlu0 %243
    %247 = vset.pattern.permute.xlu0 0
    %248 = vperm.xlu0 %247, %v58
    %v249 = vpop.permute.xlu0 %248
    %252 = vset.pattern.permute.xlu0 0
    %253 = vperm.xlu0 %252, %v59
    %v254 = vpop.permute.xlu0 %253
    %v256 = vmul.f32 %v107, %v239
    %v257 = vmul.f32 %v107, %v244
    %v258 = vmul.f32 %v107, %v249
    %v259 = vmul.f32 %v107, %v254
    %v260 = vmul.f32 %v111, %v239
    %v261 = vmul.f32 %v111, %v244
    %v262 = vmul.f32 %v111, %v249
    %v263 = vmul.f32 %v111, %v254
    %272 = vrot.lane.b32.xlu0 %v256, 127
    %v273 = vpop.permute.xlu0 %272
    %274 = vrot.lane.b32.xlu0 %v257, 127
    %v275 = vpop.permute.xlu0 %274
    %276 = vrot.lane.b32.xlu0 %v258, 127
    %v277 = vpop.permute.xlu0 %276
    %278 = vrot.lane.b32.xlu0 %v259, 127
    %v279 = vpop.permute.xlu0 %278
    %280 = vrot.lane.b32.xlu0 %v260, 127
    %v281 = vpop.permute.xlu0 %280
    %282 = vrot.lane.b32.xlu0 %v261, 127
    %v283 = vpop.permute.xlu0 %282
    %284 = vrot.lane.b32.xlu0 %v262, 127
    %v285 = vpop.permute.xlu0 %284
    %286 = vrot.lane.b32.xlu0 %v263, 127
    %v287 = vpop.permute.xlu0 %286
    %v296 = vadd.f32 %v228, %v273
    %v297 = vadd.f32 %v229, %v275
    %v298 = vadd.f32 %v230, %v277
    %v299 = vadd.f32 %v231, %v279
    %v300 = vadd.f32 %v232, %v281
    %v301 = vadd.f32 %v233, %v283
    %v302 = vadd.f32 %v234, %v285
    %v303 = vadd.f32 %v235, %v287
    %305 = vset.pattern.permute.xlu0 0
    %306 = vperm.xlu0 %305, %v60
    %v307 = vpop.permute.xlu0 %306
    %310 = vset.pattern.permute.xlu0 0
    %311 = vperm.xlu0 %310, %v61
    %v312 = vpop.permute.xlu0 %311
    %315 = vset.pattern.permute.xlu0 0
    %316 = vperm.xlu0 %315, %v62
    %v317 = vpop.permute.xlu0 %316
    %320 = vset.pattern.permute.xlu0 0
    %321 = vperm.xlu0 %320, %v63
    %v322 = vpop.permute.xlu0 %321
    %v324 = vmul.f32 %v151, %v307
    %v325 = vmul.f32 %v151, %v312
    %v326 = vmul.f32 %v151, %v317
    %v327 = vmul.f32 %v151, %v322
    %v328 = vmul.f32 %v155, %v307
    %v329 = vmul.f32 %v155, %v312
    %v330 = vmul.f32 %v155, %v317
    %v331 = vmul.f32 %v155, %v322
    %340 = vrot.lane.b32.xlu0 %v324, 127
    %v341 = vpop.permute.xlu0 %340
    %342 = vrot.lane.b32.xlu0 %v325, 127
    %v343 = vpop.permute.xlu0 %342
    %344 = vrot.lane.b32.xlu0 %v326, 127
    %v345 = vpop.permute.xlu0 %344
    %346 = vrot.lane.b32.xlu0 %v327, 127
    %v347 = vpop.permute.xlu0 %346
    %348 = vrot.lane.b32.xlu0 %v328, 127
    %v349 = vpop.permute.xlu0 %348
    %350 = vrot.lane.b32.xlu0 %v329, 127
    %v351 = vpop.permute.xlu0 %350
    %352 = vrot.lane.b32.xlu0 %v330, 127
    %v353 = vpop.permute.xlu0 %352
    %354 = vrot.lane.b32.xlu0 %v331, 127
    %v355 = vpop.permute.xlu0 %354
    %v364 = vadd.f32 %v296, %v341
    %v365 = vadd.f32 %v297, %v343
    %v366 = vadd.f32 %v298, %v345
    %v367 = vadd.f32 %v299, %v347
    %v368 = vadd.f32 %v300, %v349
    %v369 = vadd.f32 %v301, %v351
    %v370 = vadd.f32 %v302, %v353
    %v371 = vadd.f32 %v303, %v355
    %373 = vset.pattern.permute.xlu0 0
    %374 = vperm.xlu0 %373, %v64
    %v375 = vpop.permute.xlu0 %374
    %378 = vset.pattern.permute.xlu0 0
    %379 = vperm.xlu0 %378, %v65
    %v380 = vpop.permute.xlu0 %379
    %383 = vset.pattern.permute.xlu0 0
    %384 = vperm.xlu0 %383, %v66
    %v385 = vpop.permute.xlu0 %384
    %388 = vset.pattern.permute.xlu0 0
    %389 = vperm.xlu0 %388, %v67
    %v390 = vpop.permute.xlu0 %389
    %v392 = vmul.f32 %v195, %v375
    %v393 = vmul.f32 %v195, %v380
    %v394 = vmul.f32 %v195, %v385
    %v395 = vmul.f32 %v195, %v390
    %v396 = vmul.f32 %v199, %v375
    %v397 = vmul.f32 %v199, %v380
    %v398 = vmul.f32 %v199, %v385
    %v399 = vmul.f32 %v199, %v390
    %408 = vrot.lane.b32.xlu0 %v392, 127
    %v409 = vpop.permute.xlu0 %408
    %410 = vrot.lane.b32.xlu0 %v393, 127
    %v411 = vpop.permute.xlu0 %410
    %412 = vrot.lane.b32.xlu0 %v394, 127
    %v413 = vpop.permute.xlu0 %412
    %414 = vrot.lane.b32.xlu0 %v395, 127
    %v415 = vpop.permute.xlu0 %414
    %416 = vrot.lane.b32.xlu0 %v396, 127
    %v417 = vpop.permute.xlu0 %416
    %418 = vrot.lane.b32.xlu0 %v397, 127
    %v419 = vpop.permute.xlu0 %418
    %420 = vrot.lane.b32.xlu0 %v398, 127
    %v421 = vpop.permute.xlu0 %420
    %422 = vrot.lane.b32.xlu0 %v399, 127
    %v423 = vpop.permute.xlu0 %422
    %v432 = vadd.f32 %v364, %v409
    %v433 = vadd.f32 %v365, %v411
    %v434 = vadd.f32 %v366, %v413
    %v435 = vadd.f32 %v367, %v415
    %v436 = vadd.f32 %v368, %v417
    %v437 = vadd.f32 %v369, %v419
    %v438 = vadd.f32 %v370, %v421
    %v439 = vadd.f32 %v371, %v423
    %441 = vset.pattern.permute.xlu0 0
    %442 = vperm.xlu0 %441, %v68
    %v443 = vpop.permute.xlu0 %442
    %446 = vset.pattern.permute.xlu0 0
    %447 = vperm.xlu0 %446, %v69
    %v448 = vpop.permute.xlu0 %447
    %451 = vset.pattern.permute.xlu0 0
    %452 = vperm.xlu0 %451, %v70
    %v453 = vpop.permute.xlu0 %452
    %456 = vset.pattern.permute.xlu0 0
    %457 = vperm.xlu0 %456, %v71
    %v458 = vpop.permute.xlu0 %457
    %v460 = vmul.f32 %v107, %v443
    %v461 = vmul.f32 %v107, %v448
    %v462 = vmul.f32 %v107, %v453
    %v463 = vmul.f32 %v107, %v458
    %v464 = vmul.f32 %v111, %v443
    %v465 = vmul.f32 %v111, %v448
    %v466 = vmul.f32 %v111, %v453
    %v467 = vmul.f32 %v111, %v458
    %476 = vrot.lane.b32.xlu0 %v460, 126
    %v477 = vpop.permute.xlu0 %476
    %478 = vrot.lane.b32.xlu0 %v461, 126
    %v479 = vpop.permute.xlu0 %478
    %480 = vrot.lane.b32.xlu0 %v462, 126
    %v481 = vpop.permute.xlu0 %480
    %482 = vrot.lane.b32.xlu0 %v463, 126
    %v483 = vpop.permute.xlu0 %482
    %484 = vrot.lane.b32.xlu0 %v464, 126
    %v485 = vpop.permute.xlu0 %484
    %486 = vrot.lane.b32.xlu0 %v465, 126
    %v487 = vpop.permute.xlu0 %486
    %488 = vrot.lane.b32.xlu0 %v466, 126
    %v489 = vpop.permute.xlu0 %488
    %490 = vrot.lane.b32.xlu0 %v467, 126
    %v491 = vpop.permute.xlu0 %490
    %v500 = vadd.f32 %v432, %v477
    %v501 = vadd.f32 %v433, %v479
    %v502 = vadd.f32 %v434, %v481
    %v503 = vadd.f32 %v435, %v483
    %v504 = vadd.f32 %v436, %v485
    %v505 = vadd.f32 %v437, %v487
    %v506 = vadd.f32 %v438, %v489
    %v507 = vadd.f32 %v439, %v491
    %509 = vset.pattern.permute.xlu0 0
    %510 = vperm.xlu0 %509, %v72
    %v511 = vpop.permute.xlu0 %510
    %514 = vset.pattern.permute.xlu0 0
    %515 = vperm.xlu0 %514, %v73
    %v516 = vpop.permute.xlu0 %515
    %519 = vset.pattern.permute.xlu0 0
    %520 = vperm.xlu0 %519, %v74
    %v521 = vpop.permute.xlu0 %520
    %524 = vset.pattern.permute.xlu0 0
    %525 = vperm.xlu0 %524, %v75
    %v526 = vpop.permute.xlu0 %525
    %v528 = vmul.f32 %v151, %v511
    %v529 = vmul.f32 %v151, %v516
    %v530 = vmul.f32 %v151, %v521
    %v531 = vmul.f32 %v151, %v526
    %v532 = vmul.f32 %v155, %v511
    %v533 = vmul.f32 %v155, %v516
    %v534 = vmul.f32 %v155, %v521
    %v535 = vmul.f32 %v155, %v526
    %544 = vrot.lane.b32.xlu0 %v528, 126
    %v545 = vpop.permute.xlu0 %544
    %546 = vrot.lane.b32.xlu0 %v529, 126
    %v547 = vpop.permute.xlu0 %546
    %548 = vrot.lane.b32.xlu0 %v530, 126
    %v549 = vpop.permute.xlu0 %548
    %550 = vrot.lane.b32.xlu0 %v531, 126
    %v551 = vpop.permute.xlu0 %550
    %552 = vrot.lane.b32.xlu0 %v532, 126
    %v553 = vpop.permute.xlu0 %552
    %554 = vrot.lane.b32.xlu0 %v533, 126
    %v555 = vpop.permute.xlu0 %554
    %556 = vrot.lane.b32.xlu0 %v534, 126
    %v557 = vpop.permute.xlu0 %556
    %558 = vrot.lane.b32.xlu0 %v535, 126
    %v559 = vpop.permute.xlu0 %558
    %v568 = vadd.f32 %v500, %v545
    %v569 = vadd.f32 %v501, %v547
    %v570 = vadd.f32 %v502, %v549
    %v571 = vadd.f32 %v503, %v551
    %v572 = vadd.f32 %v504, %v553
    %v573 = vadd.f32 %v505, %v555
    %v574 = vadd.f32 %v506, %v557
    %v575 = vadd.f32 %v507, %v559
    %577 = vset.pattern.permute.xlu0 0
    %578 = vperm.xlu0 %577, %v76
    %v579 = vpop.permute.xlu0 %578
    %582 = vset.pattern.permute.xlu0 0
    %583 = vperm.xlu0 %582, %v77
    %v584 = vpop.permute.xlu0 %583
    %587 = vset.pattern.permute.xlu0 0
    %588 = vperm.xlu0 %587, %v78
    %v589 = vpop.permute.xlu0 %588
    %592 = vset.pattern.permute.xlu0 0
    %593 = vperm.xlu0 %592, %v79
    %v594 = vpop.permute.xlu0 %593
    %v596 = vmul.f32 %v195, %v579
    %v597 = vmul.f32 %v195, %v584
    %v598 = vmul.f32 %v195, %v589
    %v599 = vmul.f32 %v195, %v594
    %v600 = vmul.f32 %v199, %v579
    %v601 = vmul.f32 %v199, %v584
    %v602 = vmul.f32 %v199, %v589
    %v603 = vmul.f32 %v199, %v594
    %612 = vrot.lane.b32.xlu0 %v596, 126
    %v613 = vpop.permute.xlu0 %612
    %614 = vrot.lane.b32.xlu0 %v597, 126
    %v615 = vpop.permute.xlu0 %614
    %616 = vrot.lane.b32.xlu0 %v598, 126
    %v617 = vpop.permute.xlu0 %616
    %618 = vrot.lane.b32.xlu0 %v599, 126
    %v619 = vpop.permute.xlu0 %618
    %620 = vrot.lane.b32.xlu0 %v600, 126
    %v621 = vpop.permute.xlu0 %620
    %622 = vrot.lane.b32.xlu0 %v601, 126
    %v623 = vpop.permute.xlu0 %622
    %624 = vrot.lane.b32.xlu0 %v602, 126
    %v625 = vpop.permute.xlu0 %624
    %626 = vrot.lane.b32.xlu0 %v603, 126
    %v627 = vpop.permute.xlu0 %626
    %v636 = vadd.f32 %v568, %v613
    %v637 = vadd.f32 %v569, %v615
    %v638 = vadd.f32 %v570, %v617
    %v639 = vadd.f32 %v571, %v619
    %v640 = vadd.f32 %v572, %v621
    %v641 = vadd.f32 %v573, %v623
    %v642 = vadd.f32 %v574, %v625
    %v643 = vadd.f32 %v575, %v627
    %vm644 = vcmask 113664
    %v645 = vsel %vm644, %v636, 0.0
    %646 = vadd.xlane.f32.xlu0 %v645
    %v647 = vpop.xlane.xlu0 %646
    %v648 = vsel %vm644, %v637, 0.0
    %649 = vadd.xlane.f32.xlu0 %v648
    %v650 = vpop.xlane.xlu0 %649
    %v651 = vsel %vm644, %v638, 0.0
    %652 = vadd.xlane.f32.xlu0 %v651
    %v653 = vpop.xlane.xlu0 %652
    %v654 = vsel %vm644, %v639, 0.0
    %655 = vadd.xlane.f32.xlu0 %v654
    %v656 = vpop.xlane.xlu0 %655
    %v657 = vsel %vm644, %v640, 0.0
    %658 = vadd.xlane.f32.xlu0 %v657
    %v659 = vpop.xlane.xlu0 %658
    %v660 = vsel %vm644, %v641, 0.0
    %661 = vadd.xlane.f32.xlu0 %v660
    %v662 = vpop.xlane.xlu0 %661
    %v663 = vsel %vm644, %v642, 0.0
    %664 = vadd.xlane.f32.xlu0 %v663
    %v665 = vpop.xlane.xlu0 %664
    %v666 = vsel %vm644, %v643, 0.0
    %667 = vadd.xlane.f32.xlu0 %v666
    %v668 = vpop.xlane.xlu0 %667
    %v669 = vadd.f32 %v647, %v659
    %v670 = vadd.f32 %v650, %v662
    %v671 = vadd.f32 %v653, %v665
    %v672 = vadd.f32 %v656, %v668
    %v673 = vmul.f32 %v669, 0.035714287
    %v674 = vmul.f32 %v670, 0.035714287
    %v675 = vmul.f32 %v671, 0.035714287
    %v676 = vmul.f32 %v672, 0.035714287
    %v677 = vsub.f32 %v636, %v673
    %v678 = vsub.f32 %v637, %v674
    %v679 = vsub.f32 %v638, %v675
    %v680 = vsub.f32 %v639, %v676
    %v681 = vsub.f32 %v640, %v673
    %v682 = vsub.f32 %v641, %v674
    %v683 = vsub.f32 %v642, %v675
    %v684 = vsub.f32 %v643, %v676
    %v685 = vmul.f32 %v677, %v677
    %v686 = vmul.f32 %v678, %v678
    %v687 = vmul.f32 %v679, %v679
    %v688 = vmul.f32 %v680, %v680
    %v689 = vmul.f32 %v681, %v681
    %v690 = vmul.f32 %v682, %v682
    %v691 = vmul.f32 %v683, %v683
    %v692 = vmul.f32 %v684, %v684
    %v693 = vsel %vm644, %v685, 0.0
    %694 = vadd.xlane.f32.xlu0 %v693
    %v695 = vpop.xlane.xlu0 %694
    %v696 = vsel %vm644, %v686, 0.0
    %697 = vadd.xlane.f32.xlu0 %v696
    %v698 = vpop.xlane.xlu0 %697
    %v699 = vsel %vm644, %v687, 0.0
    %700 = vadd.xlane.f32.xlu0 %v699
    %v701 = vpop.xlane.xlu0 %700
    %v702 = vsel %vm644, %v688, 0.0
    %703 = vadd.xlane.f32.xlu0 %v702
    %v704 = vpop.xlane.xlu0 %703
    %v705 = vsel %vm644, %v689, 0.0
    %706 = vadd.xlane.f32.xlu0 %v705
    %v707 = vpop.xlane.xlu0 %706
    %v708 = vsel %vm644, %v690, 0.0
    %709 = vadd.xlane.f32.xlu0 %v708
    %v710 = vpop.xlane.xlu0 %709
    %v711 = vsel %vm644, %v691, 0.0
    %712 = vadd.xlane.f32.xlu0 %v711
    %v713 = vpop.xlane.xlu0 %712
    %v714 = vsel %vm644, %v692, 0.0
    %715 = vadd.xlane.f32.xlu0 %v714
    %v716 = vpop.xlane.xlu0 %715
    %v717 = vadd.f32 %v695, %v707
    %v718 = vadd.f32 %v698, %v710
    %v719 = vadd.f32 %v701, %v713
    %v720 = vadd.f32 %v704, %v716
    %v721 = vmul.f32 %v717, 0.035714287
    %v722 = vmul.f32 %v718, 0.035714287
    %v723 = vmul.f32 %v719, 0.035714287
    %v724 = vmul.f32 %v720, 0.035714287
    %v725 = vld [vmem:[%s3] sm:$0xff]
    %v726 = vld [vmem:[%s3 + $0x8] sm:$0xff]
    %v727 = vld [vmem:[%s3 + $0x10] sm:$0xff]
    %v728 = vld [vmem:[%s3 + $0x18] sm:$0xff]
    %v729 = vadd.f32 %v721, 1e-05
    %v730 = vadd.f32 %v722, 1e-05
    %v731 = vadd.f32 %v723, 1e-05
    %v732 = vadd.f32 %v724, 1e-05
    %v733 = vrsqrt.pop %v729
    %v734 = vrsqrt.pop %v730
    %v735 = vrsqrt.pop %v731
    %v736 = vrsqrt.pop %v732
    %v737 = vmul.f32 %v725, %v733
    %v738 = vmul.f32 %v726, %v734
    %v739 = vmul.f32 %v727, %v735
    %v740 = vmul.f32 %v728, %v736
    %742 = vset.pattern.permute.xlu0 0
    %743 = vperm.xlu0 %742, %v737
    %v744 = vpop.permute.xlu0 %743
    %747 = vset.pattern.permute.xlu0 0
    %748 = vperm.xlu0 %747, %v738
    %v749 = vpop.permute.xlu0 %748
    %752 = vset.pattern.permute.xlu0 0
    %753 = vperm.xlu0 %752, %v739
    %v754 = vpop.permute.xlu0 %753
    %757 = vset.pattern.permute.xlu0 0
    %758 = vperm.xlu0 %757, %v740
    %v759 = vpop.permute.xlu0 %758
    %v761 = vmul.f32 %v677, %v744
    %v762 = vmul.f32 %v678, %v749
    %v763 = vmul.f32 %v679, %v754
    %v764 = vmul.f32 %v680, %v759
    %v765 = vmul.f32 %v681, %v744
    %v766 = vmul.f32 %v682, %v749
    %v767 = vmul.f32 %v683, %v754
    %v768 = vmul.f32 %v684, %v759
    %v769 = vld [vmem:[%s4] sm:$0xff]
    %v770 = vld [vmem:[%s4 + $0x8] sm:$0xff]
    %v771 = vld [vmem:[%s4 + $0x10] sm:$0xff]
    %v772 = vld [vmem:[%s4 + $0x18] sm:$0xff]
    %774 = vset.pattern.permute.xlu0 0
    %775 = vperm.xlu0 %774, %v769
    %v776 = vpop.permute.xlu0 %775
    %779 = vset.pattern.permute.xlu0 0
    %780 = vperm.xlu0 %779, %v770
    %v781 = vpop.permute.xlu0 %780
    %784 = vset.pattern.permute.xlu0 0
    %785 = vperm.xlu0 %784, %v771
    %v786 = vpop.permute.xlu0 %785
    %789 = vset.pattern.permute.xlu0 0
    %790 = vperm.xlu0 %789, %v772
    %v791 = vpop.permute.xlu0 %790
    %v793 = vadd.f32 %v761, %v776
    %v794 = vadd.f32 %v762, %v781
    %v795 = vadd.f32 %v763, %v786
    %v796 = vadd.f32 %v764, %v791
    %v797 = vadd.f32 %v765, %v776
    %v798 = vadd.f32 %v766, %v781
    %v799 = vadd.f32 %v767, %v786
    %v800 = vadd.f32 %v768, %v791
    %v801 = vmax.f32 %v793, 0.0
    %v802 = vmax.f32 %v794, 0.0
    %v803 = vmax.f32 %v795, 0.0
    %v804 = vmax.f32 %v796, 0.0
    %v805 = vmax.f32 %v797, 0.0
    %v806 = vmax.f32 %v798, 0.0
    %v807 = vmax.f32 %v799, 0.0
    %v808 = vmax.f32 %v800, 0.0
    %v809 = vsel %vm644, %v801, 0.0
    %810 = vadd.xlane.f32.xlu0 %v809
    %v811 = vpop.xlane.xlu0 %810
    %v812 = vsel %vm644, %v802, 0.0
    %813 = vadd.xlane.f32.xlu0 %v812
    %v814 = vpop.xlane.xlu0 %813
    %v815 = vsel %vm644, %v803, 0.0
    %816 = vadd.xlane.f32.xlu0 %v815
    %v817 = vpop.xlane.xlu0 %816
    %v818 = vsel %vm644, %v804, 0.0
    %819 = vadd.xlane.f32.xlu0 %v818
    %v820 = vpop.xlane.xlu0 %819
    %v821 = vsel %vm644, %v805, 0.0
    %822 = vadd.xlane.f32.xlu0 %v821
    %v823 = vpop.xlane.xlu0 %822
    %v824 = vsel %vm644, %v806, 0.0
    %825 = vadd.xlane.f32.xlu0 %v824
    %v826 = vpop.xlane.xlu0 %825
    %v827 = vsel %vm644, %v807, 0.0
    %828 = vadd.xlane.f32.xlu0 %v827
    %v829 = vpop.xlane.xlu0 %828
    %v830 = vsel %vm644, %v808, 0.0
    %831 = vadd.xlane.f32.xlu0 %v830
    %v832 = vpop.xlane.xlu0 %831
    %v833 = vrcp.pop 14.0
    %v834 = vmul.f32 %v811, %v833
    %v835 = vmul.f32 %v814, %v833
    %v836 = vmul.f32 %v817, %v833
    %v837 = vmul.f32 %v820, %v833
    %v838 = vmul.f32 %v823, %v833
    %v839 = vmul.f32 %v826, %v833
    %v840 = vmul.f32 %v829, %v833
    %v841 = vmul.f32 %v832, %v833
    %v842 = vsel %vm644, %v801, -inf
    %843 = vmax.xlane.f32.xlu0 %v842
    %v844 = vpop.xlane.xlu0 %843
    %v845 = vsel %vm644, %v802, -inf
    %846 = vmax.xlane.f32.xlu0 %v845
    %v847 = vpop.xlane.xlu0 %846
    %v848 = vsel %vm644, %v803, -inf
    %849 = vmax.xlane.f32.xlu0 %v848
    %v850 = vpop.xlane.xlu0 %849
    %v851 = vsel %vm644, %v804, -inf
    %852 = vmax.xlane.f32.xlu0 %v851
    %v853 = vpop.xlane.xlu0 %852
    %v854 = vsel %vm644, %v805, -inf
    %855 = vmax.xlane.f32.xlu0 %v854
    %v856 = vpop.xlane.xlu0 %855
    %v857 = vsel %vm644, %v806, -inf
    %858 = vmax.xlane.f32.xlu0 %v857
    %v859 = vpop.xlane.xlu0 %858
    %v860 = vsel %vm644, %v807, -inf
    %861 = vmax.xlane.f32.xlu0 %v860
    %v862 = vpop.xlane.xlu0 %861
    %v863 = vsel %vm644, %v808, -inf
    %864 = vmax.xlane.f32.xlu0 %v863
    %v865 = vpop.xlane.xlu0 %864
    %vm866 = vcmask 7168
    %v867 = vsel %vm866, %v834, %v838
    %v868 = vsel %vm866, %v835, %v839
    %v869 = vsel %vm866, %v836, %v840
    %v870 = vsel %vm866, %v837, %v841
    %vm871 = vcmask 15360
    %v872 = vsel %vm871, %v867, %v844
    %v873 = vsel %vm871, %v868, %v847
    %v874 = vsel %vm871, %v869, %v850
    %v875 = vsel %vm871, %v870, %v853
    %vm876 = vcmask 23552
    %v877 = vsel %vm876, %v872, %v856
    %v878 = vsel %vm876, %v873, %v859
    %v879 = vsel %vm876, %v874, %v862
    %v880 = vsel %vm876, %v875, %v865
    %v881 = vld [vmem:[%s5] sm:$0x3]
    %vm882 = vcmask 261120
    %v884 = vsel %vm882, %v881, 0
    %886 = vmatprep.subr.mxu0 0.0
    %887 = vmatpush1.msra.mxu0 %v877
    %888 = vmatprep.subr.mxu0 0.0
    %889 = vmatpush1.msra.mxu0 %v878
    %890 = vmatprep.subr.mxu0 0.0
    %891 = vmatpush1.msra.mxu0 %v879
    %892 = vmatprep.subr.mxu0 0.0
    %893 = vmatpush1.msra.mxu0 %v880
    %894 = vmatprep.subr.mxu0 0.0
    %895 = vmatpush1.msra.mxu0 0.0
    %896 = vmatprep.subr.mxu0 0.0
    %897 = vmatpush1.msra.mxu0 0.0
    %898 = vmatprep.subr.mxu0 0.0
    %899 = vmatpush1.msra.mxu0 0.0
    %900 = vmatprep.subr.mxu0 0.0
    %901 = vmatpush1.msra.mxu0 0.0
    %902 = vmatprep.subr.mxu0 0.0
    %903 = vmatpush1.msra.mxu0 0.0
    %904 = vmatprep.subr.mxu0 0.0
    %905 = vmatpush1.msra.mxu0 0.0
    %906 = vmatprep.subr.mxu0 0.0
    %907 = vmatpush1.msra.mxu0 0.0
    %908 = vmatprep.subr.mxu0 0.0
    %909 = vmatpush1.msra.mxu0 0.0
    %910 = vmatprep.subr.mxu0 0.0
    %911 = vmatpush1.msra.mxu0 0.0
    %912 = vmatprep.subr.mxu0 0.0
    %913 = vmatpush1.msra.mxu0 0.0
    %914 = vmatprep.subr.mxu0 0.0
    %915 = vmatpush1.msra.mxu0 0.0
    %916 = vmatprep.subr.mxu0 0.0
    %917 = vmatpush1.msra.mxu0 0.0
    %918 = vmatprep.subr.mxu0 0.0
    %919 = vmatpush1.msra.mxu0 0.0
    %920 = vmatprep.subr.mxu0 0.0
    %921 = vmatpush1.msra.mxu0 0.0
    %922 = vmatprep.subr.mxu0 0.0
    %923 = vmatpush1.msra.mxu0 0.0
    %924 = vmatprep.subr.mxu0 0.0
    %925 = vmatpush1.msra.mxu0 0.0
    %926 = vmatprep.subr.mxu0 0.0
    %927 = vmatpush1.msra.mxu0 0.0
    %928 = vmatprep.subr.mxu0 0.0
    %929 = vmatpush1.msra.mxu0 0.0
    %930 = vmatprep.subr.mxu0 0.0
    %931 = vmatpush1.msra.mxu0 0.0
    %932 = vmatprep.subr.mxu0 0.0
    %933 = vmatpush1.msra.mxu0 0.0
    %934 = vmatprep.subr.mxu0 0.0
    %935 = vmatpush1.msra.mxu0 0.0
    %936 = vmatprep.subr.mxu0 0.0
    %937 = vmatpush1.msra.mxu0 0.0
    %938 = vmatprep.subr.mxu0 0.0
    %939 = vmatpush1.msra.mxu0 0.0
    %940 = vmatprep.subr.mxu0 0.0
    %941 = vmatpush1.msra.mxu0 0.0
    %942 = vmatprep.subr.mxu0 0.0
    %943 = vmatpush1.msra.mxu0 0.0
    %944 = vmatprep.subr.mxu0 0.0
    %945 = vmatpush1.msra.mxu0 0.0
    %946 = vmatprep.subr.mxu0 0.0
    %947 = vmatpush1.msra.mxu0 0.0
    %948 = vmatprep.subr.mxu0 0.0
    %949 = vmatpush1.msra.mxu0 0.0
    %950 = vmatprep.mubr.f32.mxu0 0.0
    %951 = vmatmul.mubr.f32.gmra.mrb[0].mxu0 %v884
    %v952 = vpop.f32.mrb[0].mxu0
    %v953 = vadd.f32 0.0, %v952
    %v954 = vpop.f32.mrb[0].mxu0
    %955 = vdwg.mxu0
    %v956 = vmax.f32 %v953, 0.0
    %v957 = vld [vmem:[%s6] sm:$0xff]
    %v958 = vld [vmem:[%s6 + $0x8] sm:$0xff]
    %v959 = vld [vmem:[%s6 + $0x10] sm:$0xff]
    %v960 = vld [vmem:[%s6 + $0x18] sm:$0xff]
    %v962 = vsel %vm871, %v957, 0
    %v965 = vsel %vm871, %v958, 0
    %v968 = vsel %vm871, %v959, 0
    %v971 = vsel %vm871, %v960, 0
    %vm973 = vcmask 1041408
    %v975 = vsel %vm973, %v956, 0
    %977 = vmatprep.subr.mxu0 0.0
    %978 = vmatpush1.msra.mxu0 %v975
    %979 = vmatprep.subr.mxu0 0.0
    %980 = vmatpush1.msra.mxu0 0.0
    %981 = vmatprep.subr.mxu0 0.0
    %982 = vmatpush1.msra.mxu0 0.0
    %983 = vmatprep.subr.mxu0 0.0
    %984 = vmatpush1.msra.mxu0 0.0
    %985 = vmatprep.subr.mxu0 0.0
    %986 = vmatpush1.msra.mxu0 0.0
    %987 = vmatprep.subr.mxu0 0.0
    %988 = vmatpush1.msra.mxu0 0.0
    %989 = vmatprep.subr.mxu0 0.0
    %990 = vmatpush1.msra.mxu0 0.0
    %991 = vmatprep.subr.mxu0 0.0
    %992 = vmatpush1.msra.mxu0 0.0
    %993 = vmatprep.subr.mxu0 0.0
    %994 = vmatpush1.msra.mxu0 0.0
    %995 = vmatprep.subr.mxu0 0.0
    %996 = vmatpush1.msra.mxu0 0.0
    %997 = vmatprep.subr.mxu0 0.0
    %998 = vmatpush1.msra.mxu0 0.0
    %999 = vmatprep.subr.mxu0 0.0
    %1000 = vmatpush1.msra.mxu0 0.0
    %1001 = vmatprep.subr.mxu0 0.0
    %1002 = vmatpush1.msra.mxu0 0.0
    %1003 = vmatprep.subr.mxu0 0.0
    %1004 = vmatpush1.msra.mxu0 0.0
    %1005 = vmatprep.subr.mxu0 0.0
    %1006 = vmatpush1.msra.mxu0 0.0
    %1007 = vmatprep.subr.mxu0 0.0
    %1008 = vmatpush1.msra.mxu0 0.0
    %1009 = vmatprep.subr.mxu0 0.0
    %1010 = vmatpush1.msra.mxu0 0.0
    %1011 = vmatprep.subr.mxu0 0.0
    %1012 = vmatpush1.msra.mxu0 0.0
    %1013 = vmatprep.subr.mxu0 0.0
    %1014 = vmatpush1.msra.mxu0 0.0
    %1015 = vmatprep.subr.mxu0 0.0
    %1016 = vmatpush1.msra.mxu0 0.0
    %1017 = vmatprep.subr.mxu0 0.0
    %1018 = vmatpush1.msra.mxu0 0.0
    %1019 = vmatprep.subr.mxu0 0.0
    %1020 = vmatpush1.msra.mxu0 0.0
    %1021 = vmatprep.subr.mxu0 0.0
    %1022 = vmatpush1.msra.mxu0 0.0
    %1023 = vmatprep.subr.mxu0 0.0
    %1024 = vmatpush1.msra.mxu0 0.0
    %1025 = vmatprep.subr.mxu0 0.0
    %1026 = vmatpush1.msra.mxu0 0.0
    %1027 = vmatprep.subr.mxu0 0.0
    %1028 = vmatpush1.msra.mxu0 0.0
    %1029 = vmatprep.subr.mxu0 0.0
    %1030 = vmatpush1.msra.mxu0 0.0
    %1031 = vmatprep.subr.mxu0 0.0
    %1032 = vmatpush1.msra.mxu0 0.0
    %1033 = vmatprep.subr.mxu0 0.0
    %1034 = vmatpush1.msra.mxu0 0.0
    %1035 = vmatprep.subr.mxu0 0.0
    %1036 = vmatpush1.msra.mxu0 0.0
    %1037 = vmatprep.subr.mxu0 0.0
    %1038 = vmatpush1.msra.mxu0 0.0
    %1039 = vmatprep.subr.mxu0 0.0
    %1040 = vmatpush1.msra.mxu0 0.0
    %1041 = vmatprep.mubr.f32.mxu0 0.0
    %1042 = vmatmul.mubr.f32.gmra.mrb[0].mxu0 %v962
    %v1043 = vpop.f32.mrb[0].mxu0
    %v1044 = vadd.f32 0.0, %v1043
    %v1045 = vpop.f32.mrb[0].mxu0
    %1046 = vmatprep.mubr.f32.mxu0 0.0
    %1047 = vmatmul.mubr.f32.gmra.mrb[0].mxu0 %v965
    %v1048 = vpop.f32.mrb[0].mxu0
    %v1049 = vadd.f32 0.0, %v1048
    %v1050 = vpop.f32.mrb[0].mxu0
    %1051 = vmatprep.mubr.f32.mxu0 0.0
    %1052 = vmatmul.mubr.f32.gmra.mrb[0].mxu0 %v968
    %v1053 = vpop.f32.mrb[0].mxu0
    %v1054 = vadd.f32 0.0, %v1053
    %v1055 = vpop.f32.mrb[0].mxu0
    %1056 = vmatprep.mubr.f32.mxu0 0.0
    %1057 = vmatmul.mubr.f32.gmra.mrb[0].mxu0 %v971
    %v1058 = vpop.f32.mrb[0].mxu0
    %v1059 = vadd.f32 0.0, %v1058
    %v1060 = vpop.f32.mrb[0].mxu0
    %1061 = vdwg.mxu0
    %1066 = vrot.lane.b32.xlu0 %v1044, 126
    %v1067 = vpop.permute.xlu0 %1066
    %1068 = vrot.lane.b32.xlu0 %v1049, 126
    %v1069 = vpop.permute.xlu0 %1068
    %1070 = vrot.lane.b32.xlu0 %v1054, 126
    %v1071 = vpop.permute.xlu0 %1070
    %1072 = vrot.lane.b32.xlu0 %v1059, 126
    %v1073 = vpop.permute.xlu0 %1072
    %v1078 = vadd.f32 %v1044, %v1067
    %v1079 = vadd.f32 %v1049, %v1069
    %v1080 = vadd.f32 %v1054, %v1071
    %v1081 = vadd.f32 %v1059, %v1073
    %1086 = vrot.lane.b32.xlu0 %v1078, 127
    %v1087 = vpop.permute.xlu0 %1086
    %1088 = vrot.lane.b32.xlu0 %v1079, 127
    %v1089 = vpop.permute.xlu0 %1088
    %1090 = vrot.lane.b32.xlu0 %v1080, 127
    %v1091 = vpop.permute.xlu0 %1090
    %1092 = vrot.lane.b32.xlu0 %v1081, 127
    %v1093 = vpop.permute.xlu0 %1092
    %v1098 = vmul.f32 %v1078, 0.5
    %v1099 = vmul.f32 %v1079, 0.5
    %v1100 = vmul.f32 %v1080, 0.5
    %v1101 = vmul.f32 %v1081, 0.5
    %v1102 = vmul.f32 %v1087, 0.5
    %v1103 = vmul.f32 %v1089, 0.5
    %v1104 = vmul.f32 %v1091, 0.5
    %v1105 = vmul.f32 %v1093, 0.5
    %v1106 = vtanh.pop %v1098
    %v1107 = vtanh.pop %v1099
    %v1108 = vtanh.pop %v1100
    %v1109 = vtanh.pop %v1101
    %v1110 = vtanh.pop %v1102
    %v1111 = vtanh.pop %v1103
    %v1112 = vtanh.pop %v1104
    %v1113 = vtanh.pop %v1105
    %v1114 = vmul.f32 %v1106, 0.5
    %v1115 = vmul.f32 %v1107, 0.5
    %v1116 = vmul.f32 %v1108, 0.5
    %v1117 = vmul.f32 %v1109, 0.5
    %v1118 = vmul.f32 %v1110, 0.5
    %v1119 = vmul.f32 %v1111, 0.5
    %v1120 = vmul.f32 %v1112, 0.5
    %v1121 = vmul.f32 %v1113, 0.5
    %v1122 = vadd.f32 %v1114, 0.5
    %v1123 = vadd.f32 %v1115, 0.5
    %v1124 = vadd.f32 %v1116, 0.5
    %v1125 = vadd.f32 %v1117, 0.5
    %v1126 = vadd.f32 %v1118, 0.5
    %v1127 = vadd.f32 %v1119, 0.5
    %v1128 = vadd.f32 %v1120, 0.5
    %v1129 = vadd.f32 %v1121, 0.5
    %1131 = vset.pattern.permute.xlu0 0
    %1132 = vperm.xlu0 %1131, %v1122
    %v1133 = vpop.permute.xlu0 %1132
    %1136 = vset.pattern.permute.xlu0 0
    %1137 = vperm.xlu0 %1136, %v1123
    %v1138 = vpop.permute.xlu0 %1137
    %1141 = vset.pattern.permute.xlu0 0
    %1142 = vperm.xlu0 %1141, %v1124
    %v1143 = vpop.permute.xlu0 %1142
    %1146 = vset.pattern.permute.xlu0 0
    %1147 = vperm.xlu0 %1146, %v1125
    %v1148 = vpop.permute.xlu0 %1147
    %1151 = vset.pattern.permute.xlu0 0
    %1152 = vperm.xlu0 %1151, %v1126
    %v1153 = vpop.permute.xlu0 %1152
    %1156 = vset.pattern.permute.xlu0 0
    %1157 = vperm.xlu0 %1156, %v1127
    %v1158 = vpop.permute.xlu0 %1157
    %1161 = vset.pattern.permute.xlu0 0
    %1162 = vperm.xlu0 %1161, %v1128
    %v1163 = vpop.permute.xlu0 %1162
    %1166 = vset.pattern.permute.xlu0 0
    %1167 = vperm.xlu0 %1166, %v1129
    %v1168 = vpop.permute.xlu0 %1167
    %v1170 = vmul.f32 %v801, %v1133
    %v1171 = vmul.f32 %v802, %v1138
    %v1172 = vmul.f32 %v803, %v1143
    %v1173 = vmul.f32 %v804, %v1148
    %v1174 = vmul.f32 %v805, %v1153
    %v1175 = vmul.f32 %v806, %v1158
    %v1176 = vmul.f32 %v807, %v1163
    %v1177 = vmul.f32 %v808, %v1168
    %v1178 = vsel %vm644, %v1170, 0.0
    %v1179 = vsel %vm644, %v1171, 0.0
    %v1180 = vadd.f32 %v1178, %v1179
    %v1181 = vsel %vm644, %v1172, 0.0
    %v1182 = vadd.f32 %v1180, %v1181
    %v1183 = vsel %vm644, %v1173, 0.0
    %v1184 = vadd.f32 %v1182, %v1183
    %v1185 = vrot.slane %v1184, 4
    %v1186 = vadd.f32 %v1184, %v1185
    %v1187 = vrot.slane %v1186, 2
    %v1188 = vadd.f32 %v1186, %v1187
    %v1189 = vrot.slane %v1188, 1
    %v1190 = vadd.f32 %v1188, %v1189
    %v1191 = vsel %vm644, %v1174, 0.0
    %v1192 = vsel %vm644, %v1175, 0.0
    %v1193 = vadd.f32 %v1191, %v1192
    %v1194 = vsel %vm644, %v1176, 0.0
    %v1195 = vadd.f32 %v1193, %v1194
    %v1196 = vsel %vm644, %v1177, 0.0
    %v1197 = vadd.f32 %v1195, %v1196
    %v1198 = vrot.slane %v1197, 4
    %v1199 = vadd.f32 %v1197, %v1198
    %v1200 = vrot.slane %v1199, 2
    %v1201 = vadd.f32 %v1199, %v1200
    %v1202 = vrot.slane %v1201, 1
    %v1203 = vadd.f32 %v1201, %v1202
    %v1204 = vrcp.pop 32.0
    %v1205 = vmul.f32 %v1190, %v1204
    %v1206 = vmul.f32 %v1203, %v1204
    %v1207 = vsel %vm644, %v1170, -inf
    %v1208 = vsel %vm644, %v1171, -inf
    %v1209 = vsel %vm644, %v1172, -inf
    %v1210 = vmax.f32 %v1207, %v1209
    %v1211 = vsel %vm644, %v1173, -inf
    %v1212 = vmax.f32 %v1208, %v1211
    %v1213 = vmax.f32 %v1210, %v1212
    %v1214 = vrot.slane %v1213, 4
    %v1215 = vmax.f32 %v1213, %v1214
    %v1216 = vrot.slane %v1215, 2
    %v1217 = vmax.f32 %v1215, %v1216
    %v1218 = vrot.slane %v1217, 1
    %v1219 = vmax.f32 %v1217, %v1218
    %v1220 = vsel %vm644, %v1174, -inf
    %v1221 = vsel %vm644, %v1175, -inf
    %v1222 = vsel %vm644, %v1176, -inf
    %v1223 = vmax.f32 %v1220, %v1222
    %v1224 = vsel %vm644, %v1177, -inf
    %v1225 = vmax.f32 %v1221, %v1224
    %v1226 = vmax.f32 %v1223, %v1225
    %v1227 = vrot.slane %v1226, 4
    %v1228 = vmax.f32 %v1226, %v1227
    %v1229 = vrot.slane %v1228, 2
    %v1230 = vmax.f32 %v1228, %v1229
    %v1231 = vrot.slane %v1230, 1
    %v1232 = vmax.f32 %v1230, %v1231
    %1235 = vrot.lane.b32.xlu0 %v1205, 3
    %v1236 = vpop.permute.xlu0 %1235
    %1237 = vrot.lane.b32.xlu0 %v1206, 3
    %v1238 = vpop.permute.xlu0 %1237
    %v1241 = vsel %vm876, 0.0, %v1236
    %v1242 = vsel %vm876, 0.0, %v1238
    %vm1243 = vcmask 138240
    %v1244 = vsel %vm1243, %v1241, 0.0
    %v1245 = vsel %vm1243, %v1242, 0.0
    %1248 = vrot.lane.b32.xlu0 %v1219, 3
    %v1249 = vpop.permute.xlu0 %1248
    %1250 = vrot.lane.b32.xlu0 %v1232, 3
    %v1251 = vpop.permute.xlu0 %1250
    %v1254 = vsel %vm876, 0.0, %v1249
    %v1255 = vsel %vm876, 0.0, %v1251
    %v1256 = vsel %vm1243, %v1254, 0.0
    %v1257 = vsel %vm1243, %v1255, 0.0
    %s1258 = sld [smem:[#allocation2]]
    %v1259 = vstv %s1258
    %v1260 = vmul.f32 %v1259, %v1244
    %v1261 = vmul.f32 %v1259, %v1245
    %v1262 = vadd.f32 %v1260, 0.0
    %v1263 = vadd.f32 %v1261, 0.0
    %s1264 = sld [smem:[#allocation2 + $0x80]]
    %v1265 = vstv %s1264
    %v1266 = vmul.f32 %v1265, %v1256
    %v1267 = vmul.f32 %v1265, %v1257
    %v1268 = vadd.f32 %v1262, %v1266
    %v1269 = vadd.f32 %v1263, %v1267
    %s1270 = sld [smem:[#allocation2 + $0x1]]
    %v1271 = vstv %s1270
    %v1272 = vmul.f32 %v1271, %v1244
    %v1273 = vmul.f32 %v1271, %v1245
    %1276 = vrot.lane.b32.xlu0 %v1272, 127
    %v1277 = vpop.permute.xlu0 %1276
    %1278 = vrot.lane.b32.xlu0 %v1273, 127
    %v1279 = vpop.permute.xlu0 %1278
    %v1282 = vadd.f32 %v1268, %v1277
    %v1283 = vadd.f32 %v1269, %v1279
    %s1284 = sld [smem:[#allocation2 + $0x81]]
    %v1285 = vstv %s1284
    %v1286 = vmul.f32 %v1285, %v1256
    %v1287 = vmul.f32 %v1285, %v1257
    %1290 = vrot.lane.b32.xlu0 %v1286, 127
    %v1291 = vpop.permute.xlu0 %1290
    %1292 = vrot.lane.b32.xlu0 %v1287, 127
    %v1293 = vpop.permute.xlu0 %1292
    %v1296 = vadd.f32 %v1282, %v1291
    %v1297 = vadd.f32 %v1283, %v1293
    %s1298 = sld [smem:[#allocation2 + $0x2]]
    %v1299 = vstv %s1298
    %v1300 = vmul.f32 %v1299, %v1244
    %v1301 = vmul.f32 %v1299, %v1245
    %1304 = vrot.lane.b32.xlu0 %v1300, 126
    %v1305 = vpop.permute.xlu0 %1304
    %1306 = vrot.lane.b32.xlu0 %v1301, 126
    %v1307 = vpop.permute.xlu0 %1306
    %v1310 = vadd.f32 %v1296, %v1305
    %v1311 = vadd.f32 %v1297, %v1307
    %s1312 = sld [smem:[#allocation2 + $0x82]]
    %v1313 = vstv %s1312
    %v1314 = vmul.f32 %v1313, %v1256
    %v1315 = vmul.f32 %v1313, %v1257
    %1318 = vrot.lane.b32.xlu0 %v1314, 126
    %v1319 = vpop.permute.xlu0 %1318
    %1320 = vrot.lane.b32.xlu0 %v1315, 126
    %v1321 = vpop.permute.xlu0 %1320
    %v1324 = vadd.f32 %v1310, %v1319
    %v1325 = vadd.f32 %v1311, %v1321
    %s1326 = sld [smem:[#allocation2 + $0x3]]
    %v1327 = vstv %s1326
    %v1328 = vmul.f32 %v1327, %v1244
    %v1329 = vmul.f32 %v1327, %v1245
    %1332 = vrot.lane.b32.xlu0 %v1328, 125
    %v1333 = vpop.permute.xlu0 %1332
    %1334 = vrot.lane.b32.xlu0 %v1329, 125
    %v1335 = vpop.permute.xlu0 %1334
    %v1338 = vadd.f32 %v1324, %v1333
    %v1339 = vadd.f32 %v1325, %v1335
    %s1340 = sld [smem:[#allocation2 + $0x83]]
    %v1341 = vstv %s1340
    %v1342 = vmul.f32 %v1341, %v1256
    %v1343 = vmul.f32 %v1341, %v1257
    %1346 = vrot.lane.b32.xlu0 %v1342, 125
    %v1347 = vpop.permute.xlu0 %1346
    %1348 = vrot.lane.b32.xlu0 %v1343, 125
    %v1349 = vpop.permute.xlu0 %1348
    %v1352 = vadd.f32 %v1338, %v1347
    %v1353 = vadd.f32 %v1339, %v1349
    %s1354 = sld [smem:[#allocation2 + $0x4]]
    %v1355 = vstv %s1354
    %v1356 = vmul.f32 %v1355, %v1244
    %v1357 = vmul.f32 %v1355, %v1245
    %1360 = vrot.lane.b32.xlu0 %v1356, 124
    %v1361 = vpop.permute.xlu0 %1360
    %1362 = vrot.lane.b32.xlu0 %v1357, 124
    %v1363 = vpop.permute.xlu0 %1362
    %v1366 = vadd.f32 %v1352, %v1361
    %v1367 = vadd.f32 %v1353, %v1363
    %s1368 = sld [smem:[#allocation2 + $0x84]]
    %v1369 = vstv %s1368
    %v1370 = vmul.f32 %v1369, %v1256
    %v1371 = vmul.f32 %v1369, %v1257
    %1374 = vrot.lane.b32.xlu0 %v1370, 124
    %v1375 = vpop.permute.xlu0 %1374
    %1376 = vrot.lane.b32.xlu0 %v1371, 124
    %v1377 = vpop.permute.xlu0 %1376
    %v1380 = vadd.f32 %v1366, %v1375
    %v1381 = vadd.f32 %v1367, %v1377
    %s1382 = sld [smem:[#allocation2 + $0x5]]
    %v1383 = vstv %s1382
    %v1384 = vmul.f32 %v1383, %v1244
    %v1385 = vmul.f32 %v1383, %v1245
    %1388 = vrot.lane.b32.xlu0 %v1384, 123
    %v1389 = vpop.permute.xlu0 %1388
    %1390 = vrot.lane.b32.xlu0 %v1385, 123
    %v1391 = vpop.permute.xlu0 %1390
    %v1394 = vadd.f32 %v1380, %v1389
    %v1395 = vadd.f32 %v1381, %v1391
    %s1396 = sld [smem:[#allocation2 + $0x85]]
    %v1397 = vstv %s1396
    %v1398 = vmul.f32 %v1397, %v1256
    %v1399 = vmul.f32 %v1397, %v1257
    %1402 = vrot.lane.b32.xlu0 %v1398, 123
    %v1403 = vpop.permute.xlu0 %1402
    %1404 = vrot.lane.b32.xlu0 %v1399, 123
    %v1405 = vpop.permute.xlu0 %1404
    %v1408 = vadd.f32 %v1394, %v1403
    %v1409 = vadd.f32 %v1395, %v1405
    %s1410 = sld [smem:[#allocation2 + $0x6]]
    %v1411 = vstv %s1410
    %v1412 = vmul.f32 %v1411, %v1244
    %v1413 = vmul.f32 %v1411, %v1245
    %1416 = vrot.lane.b32.xlu0 %v1412, 122
    %v1417 = vpop.permute.xlu0 %1416
    %1418 = vrot.lane.b32.xlu0 %v1413, 122
    %v1419 = vpop.permute.xlu0 %1418
    %v1422 = vadd.f32 %v1408, %v1417
    %v1423 = vadd.f32 %v1409, %v1419
    %s1424 = sld [smem:[#allocation2 + $0x86]]
    %v1425 = vstv %s1424
    %v1426 = vmul.f32 %v1425, %v1256
    %v1427 = vmul.f32 %v1425, %v1257
    %1430 = vrot.lane.b32.xlu0 %v1426, 122
    %v1431 = vpop.permute.xlu0 %1430
    %1432 = vrot.lane.b32.xlu0 %v1427, 122
    %v1433 = vpop.permute.xlu0 %1432
    %v1436 = vadd.f32 %v1422, %v1431
    %v1437 = vadd.f32 %v1423, %v1433
    %v1438 = vmul.f32 %v1436, 0.5
    %v1439 = vmul.f32 %v1437, 0.5
    %v1440 = vtanh.pop %v1438
    %v1441 = vtanh.pop %v1439
    %v1442 = vmul.f32 %v1440, 0.5
    %v1443 = vmul.f32 %v1441, 0.5
    %v1444 = vadd.f32 %v1442, 0.5
    %v1445 = vadd.f32 %v1443, 0.5
    %v1446 = vlaneseq
    %v1447 = vshrl.u32 %v1446, 7
    %v1448 = vsub.s32 0, %v1447
    %v1449 = vrot.slane %v1444, %v1448
    %v1450 = vlaneseq
    %v1451 = vshrl.u32 %v1450, 7
    %v1452 = vsub.s32 0, %v1451
    %v1453 = vrot.slane %v1445, %v1452
    %v1454 = vmul.f32 %v1170, %v1449
    %v1455 = vmul.f32 %v1171, %v1449
    %v1456 = vmul.f32 %v1172, %v1449
    %v1457 = vmul.f32 %v1173, %v1449
    %v1458 = vmul.f32 %v1174, %v1453
    %v1459 = vmul.f32 %v1175, %v1453
    %v1460 = vmul.f32 %v1176, %v1453
    %v1461 = vmul.f32 %v1177, %v1453
    %1462 = vst.msk [vmem:[%s8] sm:$0xff] %vm644, %v1454
    %1463 = vst.msk [vmem:[%s8 + $0x8] sm:$0xff] %vm644, %v1455
    %1464 = vst.msk [vmem:[%s8 + $0x10] sm:$0xff] %vm644, %v1456
    %1465 = vst.msk [vmem:[%s8 + $0x18] sm:$0xff] %vm644, %v1457
    %1466 = vst.msk [vmem:[%s8 + $0x20] sm:$0xff] %vm644, %v1458
    %1467 = vst.msk [vmem:[%s8 + $0x28] sm:$0xff] %vm644, %v1459
    %1468 = vst.msk [vmem:[%s8 + $0x30] sm:$0xff] %vm644, %v1460
    %1469 = vst.msk [vmem:[%s8 + $0x38] sm:$0xff] %vm644, %v1461
    // Predicated region
    $region38: #{tpu_custom_call.1} parent=1 // pred_check
      _
    $region39: #{tpu_custom_call.1} parent=1 // pred_check_branch
      %1471 = sbr.rel (0) target = $region41
    $region40: #{tpu_custom_call.1} parent=1 // pred_region
      _
    $region41: #{tpu_custom_call.1} parent=1 // pred_fallthru
      _
    // Predicated region
    $region42: #{tpu_custom_call.1} parent=1 // pred_check
      _
    $region43: #{tpu_custom_call.1} parent=1 // pred_check_branch
      %1473 = sbr.rel (0) target = $region45
    $region44: #{tpu_custom_call.1} parent=1 // pred_region
      _
    $region45: #{tpu_custom_call.1} parent=1 // pred_fallthru
      _
    %1474 = vsyncpa [#allocation3], 1

</llo_original>
